<compile_context>
chip_gen: v7x
topology: tpu7x:2x2x1
jax: 0.10.0
libtpu: 0.0.40
codegen_flags: <defaults>
</compile_context>

<pallas_src>
import jax
import jax.numpy as jnp
from jax.experimental import pallas as pl
from jax.experimental.pallas import tpu as pltpu

CP = 128       # lane width of all weight matrices / wide activations
CIN_PAD = 8    # host-side lane padding of the raw input (narrow DMA block)


# ----------------------------------------------------------------------------
# Fused Pallas kernel: [block_0, block_1, ..., linear(t = L-1)] per batch tile
# ----------------------------------------------------------------------------
def make_fused_tcn_kernel(bt, L, K, G, dilations, has_downsample):
    """Ref layout (one grid step == `bt` batch rows):
      x_ref            : (bt, L, CIN_PAD)  narrow channels-last input block
      per block i      : w1 (CP, CP), b1 (1, CP), w2 (CP, CP), b2 (1, CP)
                         [+ wd (CP, CP), bd (1, CP) iff downsample residual]
      wl (CP, CP), bl (1, CP)              final linear
      out_ref          : (bt, 1, CP)       linear output at t = L-1
    """

    def kernel(*refs):
        x_ref = refs[0]
        out_ref = refs[-1]
        wrefs = refs[1:-1]

        # Widen the narrow DMA'd input to 128 lanes (value op; padded lanes 0).
        x = x_ref[...]                                           # (bt, L, CIN_PAD)
        a = jnp.concatenate(
            [x, jnp.zeros((bt, L, CP - x.shape[-1]), jnp.float32)], axis=2)

        def shifted_narrow(a3, sh):
            # First-G-lanes view of a3, shifted down in time by `sh` with a
            # causal zero head:  out[:, t, :] = a3[:, t - sh, :G]  (0 if t<sh).
            nar = a3[:, :, :G]                                   # (bt, L, G)
            if sh == 0:
                return nar
            if sh >= L:
                return jnp.zeros((bt, L, G), jnp.float32)
            return jnp.concatenate(
                [jnp.zeros((bt, sh, G), jnp.float32), nar[:, :L - sh, :]],
                axis=1)

        def conv_relu(a3, w_ref, b_ref, d):
            # Dilated causal conv (+chomp +relu) as ONE MXU matmul: tap k lives
            # in lanes [k*G, (k+1)*G) of the packed LHS, matching the
            # host-side _conv_to_packed weight layout.
            taps = [shifted_narrow(a3, (K - 1 - k) * d) for k in range(K)]
            if K * G < CP:
                taps.append(jnp.zeros((bt, L, CP - K * G), jnp.float32))
            packed = jnp.concatenate(taps, axis=2)               # (bt, L, CP)
            h = jnp.dot(packed.reshape(bt * L, CP), w_ref[...],
                        preferred_element_type=jnp.float32)
            return jnp.maximum(h + b_ref[...], 0.0)              # (bt*L, CP)

        p = 0
        for i, d in enumerate(dilations):
            w1, b1, w2, b2 = wrefs[p:p + 4]
            p += 4
            h = conv_relu(a, w1, b1, d)                          # conv1->chomp->relu
            h = conv_relu(h.reshape(bt, L, CP), w2, b2, d)       # conv2->chomp->relu
            if has_downsample[i]:
                wd, bd = wrefs[p:p + 2]
                p += 2
                res = jnp.dot(a.reshape(bt * L, CP), wd[...],
                              preferred_element_type=jnp.float32) + bd[...]
            else:
                res = a.reshape(bt * L, CP)                      # identity residual
            a = jnp.maximum(h + res, 0.0).reshape(bt, L, CP)

        # Final linear on the last timestep only (== torch x[:, :, -1]).
        wl_ref, bl_ref = wrefs[p], wrefs[p + 1]
        last = a[:, L - 1, :]                                    # (bt, CP)
        y = jnp.dot(last, wl_ref[...],
                    preferred_element_type=jnp.float32) + bl_ref[...]
        out_ref[...] = y.reshape(bt, 1, CP).astype(out_ref.dtype)

    return kernel


# ----------------------------------------------------------------------------
# Wrapper: layout plumbing + single pallas_call
# ----------------------------------------------------------------------------
def my_tcn_forward(x_ncl, params):
    """x_ncl: (B, C_in, L) PyTorch Conv1d layout. Returns (B, output_size)."""
    B, C_in, L = x_ncl.shape
    K = params['kernel_size']
    out_size = params['output_size']
    G = CP // K
    dilations = tuple(blk['dilation'] for blk in params['blocks'])
    has_ds = tuple(blk['wd'] is not None for blk in params['blocks'])
    assert C_in <= CIN_PAD and C_in <= G

    # Batch tile: fill the MXU M dim (target bt*L >= 128) while keeping the
    # live (bt*L, 128) f32 temps well inside v7x's 64 MiB VMEM.
    bt = max(1, min(B, -(-128 // L), (8 * 1024 * 1024) // (L * CP * 4)))
    Bp = -(-B // bt) * bt                        # pad batch to a multiple of bt

    # Narrow (8-lane) channels-last input: ~16x less HBM traffic than a
    # pre-padded 128-lane copy; widened to 128 lanes inside the kernel.
    x = jnp.transpose(x_ncl, (0, 2, 1)).astype(jnp.float32)          # (B, L, C_in)
    xp = jnp.zeros((Bp, L, CIN_PAD), jnp.float32).at[:B, :, :C_in].set(x)

    inputs = [xp]
    in_specs = [pl.BlockSpec((bt, L, CIN_PAD), lambda b: (b, 0, 0))]

    def add_const(arr):
        # Whole-array block, same block index every grid step (fetched once).
        # (pl.Buffered(1) single-buffering would halve constant VMEM; omitted
        #  here since the total constant footprint is < 1 MiB.)
        inputs.append(arr)
        in_specs.append(pl.BlockSpec(arr.shape, lambda b, _n=arr.ndim: (0,) * _n))

    for blk in params['blocks']:
        add_const(blk['w1']); add_const(blk['b1'])
        add_const(blk['w2']); add_const(blk['b2'])
        if blk['wd'] is not None:
            add_const(blk['wd']); add_const(blk['bd'])
    add_const(params['wl']); add_const(params['bl'])

    kernel = make_fused_tcn_kernel(bt, L, K, G, dilations, has_ds)
    out = pl.pallas_call(
        kernel,
        out_shape=jax.ShapeDtypeStruct((Bp, 1, CP), jnp.float32),
        grid=(Bp // bt,),
        in_specs=in_specs,
        out_specs=pl.BlockSpec((bt, 1, CP), lambda b: (b, 0, 0)),
        compiler_params=pltpu.CompilerParams(
            dimension_semantics=("parallel",),     # batch tiles across v7x's 2 TCs
            vmem_limit_bytes=32 * 1024 * 1024),
    )(*inputs)
    return out[:B, 0, :out_size]                                     # (B, output_size)


# ----------------------------------------------------------------------------
# Parameter setup (weight_norm fold, tap-packed conv weights, lane padding)
# ----------------------------------------------------------------------------
def _fold_weight_norm(v, g):
    # weight_norm: w = g * v / ||v||, norm over all dims except dim 0
    norm = jnp.sqrt(jnp.sum(v * v, axis=(1, 2), keepdims=True))
    return v * (g.reshape(-1, 1, 1) / norm)


def _conv_to_packed(w, K, G):
    # torch conv weight (c_out, c_in, K) -> (CP, CP) tap-packed weight:
    # row k*G + c holds w[:, c, k]; tap k of the in-kernel LHS occupies lanes
    # [k*G, (k+1)*G).
    c_out, c_in, _ = w.shape
    assert c_in <= G and c_out <= CP
    wt = jnp.transpose(w, (2, 1, 0))                                 # (K, c_in, c_out)
    wp = jnp.zeros((K, G, CP), jnp.float32).at[:, :c_in, :c_out].set(wt)
    wp = wp.reshape(K * G, CP)
    if K * G < CP:
        wp = jnp.concatenate([wp, jnp.zeros((CP - K * G, CP), jnp.float32)], 0)
    return wp


def _pad_mat(w):
    # (c_in, c_out) -> (CP, CP), zero padded
    return jnp.zeros((CP, CP), jnp.float32).at[:w.shape[0], :w.shape[1]].set(w)


def _pad_row(b):
    # (c,) -> (1, CP), zero padded
    return jnp.zeros((1, CP), jnp.float32).at[0, :b.shape[0]].set(b)


def init_params(key, input_size=2, output_size=1, num_channels=(5, 5),
                kernel_size=4):
    K = kernel_size
    G = CP // K
    blocks = []
    for i, c_out in enumerate(num_channels):
        c_in = input_size if i == 0 else num_channels[i - 1]
        key, k1, k2, k3, k4, k5, k6 = jax.random.split(key, 7)
        # conv weights ~ N(0, 0.01); weight_norm init g = ||v||  =>  w == v
        v1 = 0.01 * jax.random.normal(k1, (c_out, c_in, K), jnp.float32)
        g1 = jnp.sqrt(jnp.sum(v1 * v1, axis=(1, 2)))
        b1 = 0.1 * jax.random.normal(k2, (c_out,), jnp.float32)
        v2 = 0.01 * jax.random.normal(k3, (c_out, c_out, K), jnp.float32)
        g2 = jnp.sqrt(jnp.sum(v2 * v2, axis=(1, 2)))
        b2 = 0.1 * jax.random.normal(k4, (c_out,), jnp.float32)
        blk = dict(
            w1=_conv_to_packed(_fold_weight_norm(v1, g1), K, G), b1=_pad_row(b1),
            w2=_conv_to_packed(_fold_weight_norm(v2, g2), K, G), b2=_pad_row(b2),
            dilation=2 ** i)
        if c_in != c_out:          # downsample_i = Conv1d(n_in, n_out, 1)
            wd = 0.01 * jax.random.normal(k5, (c_out, c_in, 1), jnp.float32)
            bd = 0.1 * jax.random.normal(k6, (c_out,), jnp.float32)
            blk['wd'] = _pad_mat(jnp.transpose(wd[:, :, 0], (1, 0)))
            blk['bd'] = _pad_row(bd)
        else:                      # downsample_i is None -> identity residual
            blk['wd'] = None
            blk['bd'] = None
        blocks.append(blk)
    key, kl1, kl2 = jax.random.split(key, 3)
    wl = 0.01 * jax.random.normal(kl1, (output_size, num_channels[-1]), jnp.float32)
    bl = 0.1 * jax.random.normal(kl2, (output_size,), jnp.float32)
    return dict(blocks=blocks, wl=_pad_mat(jnp.transpose(wl, (1, 0))),
                bl=_pad_row(bl), kernel_size=K, output_size=output_size)


if __name__ == "__main__":
    key = jax.random.PRNGKey(0)
    pkey, xkey = jax.random.split(key)
    params = init_params(pkey, input_size=2, output_size=1,
                         num_channels=(5, 5), kernel_size=4)

    B, C_in, L = 2, 2, 16
    x = jax.random.normal(xkey, (B, C_in, L), jnp.float32)   # PyTorch NCL layout

    fwd = jax.jit(lambda xx: my_tcn_forward(xx, params))
    out = fwd(x)
    jax.block_until_ready(out)
    assert out.shape == (B, 1) and out.dtype == jnp.float32
    print("KERNEL_OK")
</pallas_src>

<mosaic_0001>
module attributes {stable_mosaic.version = 11 : i64} {
  func.func @kernel(%arg0: i32, %arg1: memref<2x16x8xf32, #tpu.memory_space<vmem>>, %arg2: memref<128x128xf32, #tpu.memory_space<vmem>>, %arg3: memref<1x128xf32, #tpu.memory_space<vmem>>, %arg4: memref<128x128xf32, #tpu.memory_space<vmem>>, %arg5: memref<1x128xf32, #tpu.memory_space<vmem>>, %arg6: memref<128x128xf32, #tpu.memory_space<vmem>>, %arg7: memref<1x128xf32, #tpu.memory_space<vmem>>, %arg8: memref<128x128xf32, #tpu.memory_space<vmem>>, %arg9: memref<1x128xf32, #tpu.memory_space<vmem>>, %arg10: memref<128x128xf32, #tpu.memory_space<vmem>>, %arg11: memref<1x128xf32, #tpu.memory_space<vmem>>, %arg12: memref<128x128xf32, #tpu.memory_space<vmem>>, %arg13: memref<1x128xf32, #tpu.memory_space<vmem>>, %arg14: memref<2x1x128xf32, #tpu.memory_space<vmem>>) attributes {dimension_semantics = [#tpu.dimension_semantics<parallel>], iteration_bounds = array<i64: 1>, scalar_prefetch = 0 : i64, scratch_operands = 0 : i64, tpu.core_type = #tpu.core_type<tc>, window_params = [{transform_indices = @transform_0, window_bounds = array<i64: 2, 16, 8>}, {pipeline_mode = #tpu.pipeline_mode<synchronous>, transform_indices = @transform_1, window_bounds = array<i64: 128, 128>}, {pipeline_mode = #tpu.pipeline_mode<synchronous>, transform_indices = @transform_2, window_bounds = array<i64: 1, 128>}, {pipeline_mode = #tpu.pipeline_mode<synchronous>, transform_indices = @transform_3, window_bounds = array<i64: 128, 128>}, {pipeline_mode = #tpu.pipeline_mode<synchronous>, transform_indices = @transform_4, window_bounds = array<i64: 1, 128>}, {pipeline_mode = #tpu.pipeline_mode<synchronous>, transform_indices = @transform_5, window_bounds = array<i64: 128, 128>}, {pipeline_mode = #tpu.pipeline_mode<synchronous>, transform_indices = @transform_6, window_bounds = array<i64: 1, 128>}, {pipeline_mode = #tpu.pipeline_mode<synchronous>, transform_indices = @transform_7, window_bounds = array<i64: 128, 128>}, {pipeline_mode = #tpu.pipeline_mode<synchronous>, transform_indices = @transform_8, window_bounds = array<i64: 1, 128>}, {pipeline_mode = #tpu.pipeline_mode<synchronous>, transform_indices = @transform_9, window_bounds = array<i64: 128, 128>}, {pipeline_mode = #tpu.pipeline_mode<synchronous>, transform_indices = @transform_10, window_bounds = array<i64: 1, 128>}, {pipeline_mode = #tpu.pipeline_mode<synchronous>, transform_indices = @transform_11, window_bounds = array<i64: 128, 128>}, {pipeline_mode = #tpu.pipeline_mode<synchronous>, transform_indices = @transform_12, window_bounds = array<i64: 1, 128>}, {transform_indices = @transform_13, window_bounds = array<i64: 2, 1, 128>}]} {
    %c0 = arith.constant 0 : index
    %c0_0 = arith.constant 0 : index
    %c0_1 = arith.constant 0 : index
    %0 = vector.load %arg1[%c0, %c0_0, %c0_1] : memref<2x16x8xf32, #tpu.memory_space<vmem>>, vector<2x16x8xf32>
    %cst = arith.constant 0.000000e+00 : f32
    %1 = vector.broadcast %cst : f32 to vector<2x16x120xf32>
    %2 = tpu.concatenate %0, %1 in 2 : vector<2x16x8xf32>, vector<2x16x120xf32> -> vector<2x16x128xf32>
    %3 = vector.extract_strided_slice %2 {offsets = [0, 0, 0], sizes = [2, 16, 32], strides = [1, 1, 1]} : vector<2x16x128xf32> to vector<2x16x32xf32>
    %cst_2 = arith.constant 0.000000e+00 : f32
    %4 = vector.broadcast %cst_2 : f32 to vector<2x3x32xf32>
    %5 = vector.extract_strided_slice %3 {offsets = [0, 0, 0], sizes = [2, 13, 32], strides = [1, 1, 1]} : vector<2x16x32xf32> to vector<2x13x32xf32>
    %6 = tpu.concatenate %4, %5 in 1 : vector<2x3x32xf32>, vector<2x13x32xf32> -> vector<2x16x32xf32>
    %7 = vector.extract_strided_slice %2 {offsets = [0, 0, 0], sizes = [2, 16, 32], strides = [1, 1, 1]} : vector<2x16x128xf32> to vector<2x16x32xf32>
    %cst_3 = arith.constant 0.000000e+00 : f32
    %8 = vector.broadcast %cst_3 : f32 to vector<2x2x32xf32>
    %9 = vector.extract_strided_slice %7 {offsets = [0, 0, 0], sizes = [2, 14, 32], strides = [1, 1, 1]} : vector<2x16x32xf32> to vector<2x14x32xf32>
    %10 = tpu.concatenate %8, %9 in 1 : vector<2x2x32xf32>, vector<2x14x32xf32> -> vector<2x16x32xf32>
    %11 = vector.extract_strided_slice %2 {offsets = [0, 0, 0], sizes = [2, 16, 32], strides = [1, 1, 1]} : vector<2x16x128xf32> to vector<2x16x32xf32>
    %cst_4 = arith.constant 0.000000e+00 : f32
    %12 = vector.broadcast %cst_4 : f32 to vector<2x1x32xf32>
    %13 = vector.extract_strided_slice %11 {offsets = [0, 0, 0], sizes = [2, 15, 32], strides = [1, 1, 1]} : vector<2x16x32xf32> to vector<2x15x32xf32>
    %14 = tpu.concatenate %12, %13 in 1 : vector<2x1x32xf32>, vector<2x15x32xf32> -> vector<2x16x32xf32>
    %15 = vector.extract_strided_slice %2 {offsets = [0, 0, 0], sizes = [2, 16, 32], strides = [1, 1, 1]} : vector<2x16x128xf32> to vector<2x16x32xf32>
    %16 = tpu.concatenate %6, %10, %14, %15 in 2 : vector<2x16x32xf32>, vector<2x16x32xf32>, vector<2x16x32xf32>, vector<2x16x32xf32> -> vector<2x16x128xf32>
    %17 = vector.shape_cast %16 : vector<2x16x128xf32> to vector<32x128xf32>
    %c0_5 = arith.constant 0 : index
    %c0_6 = arith.constant 0 : index
    %18 = vector.load %arg2[%c0_5, %c0_6] : memref<128x128xf32, #tpu.memory_space<vmem>>, vector<128x128xf32>
    %cst_7 = arith.constant dense<0.000000e+00> : vector<32x128xf32>
    %19 = tpu.matmul %17, %18, %cst_7 {dimension_numbers = #tpu.dot_dimension_numbers<[1], [0], [0], [1], [0, 0, 1, 1], [], []>} : vector<32x128xf32>, vector<128x128xf32>, vector<32x128xf32> -> vector<32x128xf32>
    %c0_8 = arith.constant 0 : index
    %c0_9 = arith.constant 0 : index
    %20 = vector.load %arg3[%c0_8, %c0_9] : memref<1x128xf32, #tpu.memory_space<vmem>>, vector<1x128xf32>
    %21 = vector.broadcast %20 : vector<1x128xf32> to vector<32x128xf32>
    %22 = arith.addf %19, %21 : vector<32x128xf32>
    %cst_10 = arith.constant 0.000000e+00 : f32
    %23 = vector.broadcast %cst_10 : f32 to vector<32x128xf32>
    %24 = arith.maximumf %22, %23 : vector<32x128xf32>
    %25 = vector.shape_cast %24 : vector<32x128xf32> to vector<2x16x128xf32>
    %26 = vector.extract_strided_slice %25 {offsets = [0, 0, 0], sizes = [2, 16, 32], strides = [1, 1, 1]} : vector<2x16x128xf32> to vector<2x16x32xf32>
    %cst_11 = arith.constant 0.000000e+00 : f32
    %27 = vector.broadcast %cst_11 : f32 to vector<2x3x32xf32>
    %28 = vector.extract_strided_slice %26 {offsets = [0, 0, 0], sizes = [2, 13, 32], strides = [1, 1, 1]} : vector<2x16x32xf32> to vector<2x13x32xf32>
    %29 = tpu.concatenate %27, %28 in 1 : vector<2x3x32xf32>, vector<2x13x32xf32> -> vector<2x16x32xf32>
    %30 = vector.extract_strided_slice %25 {offsets = [0, 0, 0], sizes = [2, 16, 32], strides = [1, 1, 1]} : vector<2x16x128xf32> to vector<2x16x32xf32>
    %cst_12 = arith.constant 0.000000e+00 : f32
    %31 = vector.broadcast %cst_12 : f32 to vector<2x2x32xf32>
    %32 = vector.extract_strided_slice %30 {offsets = [0, 0, 0], sizes = [2, 14, 32], strides = [1, 1, 1]} : vector<2x16x32xf32> to vector<2x14x32xf32>
    %33 = tpu.concatenate %31, %32 in 1 : vector<2x2x32xf32>, vector<2x14x32xf32> -> vector<2x16x32xf32>
    %34 = vector.extract_strided_slice %25 {offsets = [0, 0, 0], sizes = [2, 16, 32], strides = [1, 1, 1]} : vector<2x16x128xf32> to vector<2x16x32xf32>
    %cst_13 = arith.constant 0.000000e+00 : f32
    %35 = vector.broadcast %cst_13 : f32 to vector<2x1x32xf32>
    %36 = vector.extract_strided_slice %34 {offsets = [0, 0, 0], sizes = [2, 15, 32], strides = [1, 1, 1]} : vector<2x16x32xf32> to vector<2x15x32xf32>
    %37 = tpu.concatenate %35, %36 in 1 : vector<2x1x32xf32>, vector<2x15x32xf32> -> vector<2x16x32xf32>
    %38 = vector.extract_strided_slice %25 {offsets = [0, 0, 0], sizes = [2, 16, 32], strides = [1, 1, 1]} : vector<2x16x128xf32> to vector<2x16x32xf32>
    %39 = tpu.concatenate %29, %33, %37, %38 in 2 : vector<2x16x32xf32>, vector<2x16x32xf32>, vector<2x16x32xf32>, vector<2x16x32xf32> -> vector<2x16x128xf32>
    %40 = vector.shape_cast %39 : vector<2x16x128xf32> to vector<32x128xf32>
    %c0_14 = arith.constant 0 : index
    %c0_15 = arith.constant 0 : index
    %41 = vector.load %arg4[%c0_14, %c0_15] : memref<128x128xf32, #tpu.memory_space<vmem>>, vector<128x128xf32>
    %cst_16 = arith.constant dense<0.000000e+00> : vector<32x128xf32>
    %42 = tpu.matmul %40, %41, %cst_16 {dimension_numbers = #tpu.dot_dimension_numbers<[1], [0], [0], [1], [0, 0, 1, 1], [], []>} : vector<32x128xf32>, vector<128x128xf32>, vector<32x128xf32> -> vector<32x128xf32>
    %c0_17 = arith.constant 0 : index
    %c0_18 = arith.constant 0 : index
    %43 = vector.load %arg5[%c0_17, %c0_18] : memref<1x128xf32, #tpu.memory_space<vmem>>, vector<1x128xf32>
    %44 = vector.broadcast %43 : vector<1x128xf32> to vector<32x128xf32>
    %45 = arith.addf %42, %44 : vector<32x128xf32>
    %cst_19 = arith.constant 0.000000e+00 : f32
    %46 = vector.broadcast %cst_19 : f32 to vector<32x128xf32>
    %47 = arith.maximumf %45, %46 : vector<32x128xf32>
    %48 = vector.shape_cast %2 : vector<2x16x128xf32> to vector<32x128xf32>
    %c0_20 = arith.constant 0 : index
    %c0_21 = arith.constant 0 : index
    %49 = vector.load %arg6[%c0_20, %c0_21] : memref<128x128xf32, #tpu.memory_space<vmem>>, vector<128x128xf32>
    %cst_22 = arith.constant dense<0.000000e+00> : vector<32x128xf32>
    %50 = tpu.matmul %48, %49, %cst_22 {dimension_numbers = #tpu.dot_dimension_numbers<[1], [0], [0], [1], [0, 0, 1, 1], [], []>} : vector<32x128xf32>, vector<128x128xf32>, vector<32x128xf32> -> vector<32x128xf32>
    %c0_23 = arith.constant 0 : index
    %c0_24 = arith.constant 0 : index
    %51 = vector.load %arg7[%c0_23, %c0_24] : memref<1x128xf32, #tpu.memory_space<vmem>>, vector<1x128xf32>
    %52 = vector.broadcast %51 : vector<1x128xf32> to vector<32x128xf32>
    %53 = arith.addf %50, %52 : vector<32x128xf32>
    %54 = arith.addf %47, %53 : vector<32x128xf32>
    %cst_25 = arith.constant 0.000000e+00 : f32
    %55 = vector.broadcast %cst_25 : f32 to vector<32x128xf32>
    %56 = arith.maximumf %54, %55 : vector<32x128xf32>
    %57 = vector.shape_cast %56 : vector<32x128xf32> to vector<2x16x128xf32>
    %58 = vector.extract_strided_slice %57 {offsets = [0, 0, 0], sizes = [2, 16, 32], strides = [1, 1, 1]} : vector<2x16x128xf32> to vector<2x16x32xf32>
    %cst_26 = arith.constant 0.000000e+00 : f32
    %59 = vector.broadcast %cst_26 : f32 to vector<2x6x32xf32>
    %60 = vector.extract_strided_slice %58 {offsets = [0, 0, 0], sizes = [2, 10, 32], strides = [1, 1, 1]} : vector<2x16x32xf32> to vector<2x10x32xf32>
    %61 = tpu.concatenate %59, %60 in 1 : vector<2x6x32xf32>, vector<2x10x32xf32> -> vector<2x16x32xf32>
    %62 = vector.extract_strided_slice %57 {offsets = [0, 0, 0], sizes = [2, 16, 32], strides = [1, 1, 1]} : vector<2x16x128xf32> to vector<2x16x32xf32>
    %cst_27 = arith.constant 0.000000e+00 : f32
    %63 = vector.broadcast %cst_27 : f32 to vector<2x4x32xf32>
    %64 = vector.extract_strided_slice %62 {offsets = [0, 0, 0], sizes = [2, 12, 32], strides = [1, 1, 1]} : vector<2x16x32xf32> to vector<2x12x32xf32>
    %65 = tpu.concatenate %63, %64 in 1 : vector<2x4x32xf32>, vector<2x12x32xf32> -> vector<2x16x32xf32>
    %66 = vector.extract_strided_slice %57 {offsets = [0, 0, 0], sizes = [2, 16, 32], strides = [1, 1, 1]} : vector<2x16x128xf32> to vector<2x16x32xf32>
    %cst_28 = arith.constant 0.000000e+00 : f32
    %67 = vector.broadcast %cst_28 : f32 to vector<2x2x32xf32>
    %68 = vector.extract_strided_slice %66 {offsets = [0, 0, 0], sizes = [2, 14, 32], strides = [1, 1, 1]} : vector<2x16x32xf32> to vector<2x14x32xf32>
    %69 = tpu.concatenate %67, %68 in 1 : vector<2x2x32xf32>, vector<2x14x32xf32> -> vector<2x16x32xf32>
    %70 = vector.extract_strided_slice %57 {offsets = [0, 0, 0], sizes = [2, 16, 32], strides = [1, 1, 1]} : vector<2x16x128xf32> to vector<2x16x32xf32>
    %71 = tpu.concatenate %61, %65, %69, %70 in 2 : vector<2x16x32xf32>, vector<2x16x32xf32>, vector<2x16x32xf32>, vector<2x16x32xf32> -> vector<2x16x128xf32>
    %72 = vector.shape_cast %71 : vector<2x16x128xf32> to vector<32x128xf32>
    %c0_29 = arith.constant 0 : index
    %c0_30 = arith.constant 0 : index
    %73 = vector.load %arg8[%c0_29, %c0_30] : memref<128x128xf32, #tpu.memory_space<vmem>>, vector<128x128xf32>
    %cst_31 = arith.constant dense<0.000000e+00> : vector<32x128xf32>
    %74 = tpu.matmul %72, %73, %cst_31 {dimension_numbers = #tpu.dot_dimension_numbers<[1], [0], [0], [1], [0, 0, 1, 1], [], []>} : vector<32x128xf32>, vector<128x128xf32>, vector<32x128xf32> -> vector<32x128xf32>
    %c0_32 = arith.constant 0 : index
    %c0_33 = arith.constant 0 : index
    %75 = vector.load %arg9[%c0_32, %c0_33] : memref<1x128xf32, #tpu.memory_space<vmem>>, vector<1x128xf32>
    %76 = vector.broadcast %75 : vector<1x128xf32> to vector<32x128xf32>
    %77 = arith.addf %74, %76 : vector<32x128xf32>
    %cst_34 = arith.constant 0.000000e+00 : f32
    %78 = vector.broadcast %cst_34 : f32 to vector<32x128xf32>
    %79 = arith.maximumf %77, %78 : vector<32x128xf32>
    %80 = vector.shape_cast %79 : vector<32x128xf32> to vector<2x16x128xf32>
    %81 = vector.extract_strided_slice %80 {offsets = [0, 0, 0], sizes = [2, 16, 32], strides = [1, 1, 1]} : vector<2x16x128xf32> to vector<2x16x32xf32>
    %cst_35 = arith.constant 0.000000e+00 : f32
    %82 = vector.broadcast %cst_35 : f32 to vector<2x6x32xf32>
    %83 = vector.extract_strided_slice %81 {offsets = [0, 0, 0], sizes = [2, 10, 32], strides = [1, 1, 1]} : vector<2x16x32xf32> to vector<2x10x32xf32>
    %84 = tpu.concatenate %82, %83 in 1 : vector<2x6x32xf32>, vector<2x10x32xf32> -> vector<2x16x32xf32>
    %85 = vector.extract_strided_slice %80 {offsets = [0, 0, 0], sizes = [2, 16, 32], strides = [1, 1, 1]} : vector<2x16x128xf32> to vector<2x16x32xf32>
    %cst_36 = arith.constant 0.000000e+00 : f32
    %86 = vector.broadcast %cst_36 : f32 to vector<2x4x32xf32>
    %87 = vector.extract_strided_slice %85 {offsets = [0, 0, 0], sizes = [2, 12, 32], strides = [1, 1, 1]} : vector<2x16x32xf32> to vector<2x12x32xf32>
    %88 = tpu.concatenate %86, %87 in 1 : vector<2x4x32xf32>, vector<2x12x32xf32> -> vector<2x16x32xf32>
    %89 = vector.extract_strided_slice %80 {offsets = [0, 0, 0], sizes = [2, 16, 32], strides = [1, 1, 1]} : vector<2x16x128xf32> to vector<2x16x32xf32>
    %cst_37 = arith.constant 0.000000e+00 : f32
    %90 = vector.broadcast %cst_37 : f32 to vector<2x2x32xf32>
    %91 = vector.extract_strided_slice %89 {offsets = [0, 0, 0], sizes = [2, 14, 32], strides = [1, 1, 1]} : vector<2x16x32xf32> to vector<2x14x32xf32>
    %92 = tpu.concatenate %90, %91 in 1 : vector<2x2x32xf32>, vector<2x14x32xf32> -> vector<2x16x32xf32>
    %93 = vector.extract_strided_slice %80 {offsets = [0, 0, 0], sizes = [2, 16, 32], strides = [1, 1, 1]} : vector<2x16x128xf32> to vector<2x16x32xf32>
    %94 = tpu.concatenate %84, %88, %92, %93 in 2 : vector<2x16x32xf32>, vector<2x16x32xf32>, vector<2x16x32xf32>, vector<2x16x32xf32> -> vector<2x16x128xf32>
    %95 = vector.shape_cast %94 : vector<2x16x128xf32> to vector<32x128xf32>
    %c0_38 = arith.constant 0 : index
    %c0_39 = arith.constant 0 : index
    %96 = vector.load %arg10[%c0_38, %c0_39] : memref<128x128xf32, #tpu.memory_space<vmem>>, vector<128x128xf32>
    %cst_40 = arith.constant dense<0.000000e+00> : vector<32x128xf32>
    %97 = tpu.matmul %95, %96, %cst_40 {dimension_numbers = #tpu.dot_dimension_numbers<[1], [0], [0], [1], [0, 0, 1, 1], [], []>} : vector<32x128xf32>, vector<128x128xf32>, vector<32x128xf32> -> vector<32x128xf32>
    %c0_41 = arith.constant 0 : index
    %c0_42 = arith.constant 0 : index
    %98 = vector.load %arg11[%c0_41, %c0_42] : memref<1x128xf32, #tpu.memory_space<vmem>>, vector<1x128xf32>
    %99 = vector.broadcast %98 : vector<1x128xf32> to vector<32x128xf32>
    %100 = arith.addf %97, %99 : vector<32x128xf32>
    %cst_43 = arith.constant 0.000000e+00 : f32
    %101 = vector.broadcast %cst_43 : f32 to vector<32x128xf32>
    %102 = arith.maximumf %100, %101 : vector<32x128xf32>
    %103 = vector.shape_cast %57 : vector<2x16x128xf32> to vector<32x128xf32>
    %104 = arith.addf %102, %103 : vector<32x128xf32>
    %cst_44 = arith.constant 0.000000e+00 : f32
    %105 = vector.broadcast %cst_44 : f32 to vector<32x128xf32>
    %106 = arith.maximumf %104, %105 : vector<32x128xf32>
    %107 = vector.shape_cast %106 : vector<32x128xf32> to vector<2x16x128xf32>
    %108 = vector.extract_strided_slice %107 {offsets = [0, 15, 0], sizes = [2, 1, 128], strides = [1, 1, 1]} : vector<2x16x128xf32> to vector<2x1x128xf32>
    %109 = vector.shape_cast %108 : vector<2x1x128xf32> to vector<2x128xf32>
    %c0_45 = arith.constant 0 : index
    %c0_46 = arith.constant 0 : index
    %110 = vector.load %arg12[%c0_45, %c0_46] : memref<128x128xf32, #tpu.memory_space<vmem>>, vector<128x128xf32>
    %cst_47 = arith.constant dense<0.000000e+00> : vector<2x128xf32>
    %111 = tpu.matmul %109, %110, %cst_47 {dimension_numbers = #tpu.dot_dimension_numbers<[1], [0], [0], [1], [0, 0, 1, 1], [], []>} : vector<2x128xf32>, vector<128x128xf32>, vector<2x128xf32> -> vector<2x128xf32>
    %c0_48 = arith.constant 0 : index
    %c0_49 = arith.constant 0 : index
    %112 = vector.load %arg13[%c0_48, %c0_49] : memref<1x128xf32, #tpu.memory_space<vmem>>, vector<1x128xf32>
    %113 = vector.broadcast %112 : vector<1x128xf32> to vector<2x128xf32>
    %114 = arith.addf %111, %113 : vector<2x128xf32>
    %115 = vector.shape_cast %114 : vector<2x128xf32> to vector<2x1x128xf32>
    %c0_50 = arith.constant 0 : index
    %c0_51 = arith.constant 0 : index
    %c0_52 = arith.constant 0 : index
    %116 = vector.load %arg14[%c0_50, %c0_51, %c0_52] : memref<2x1x128xf32, #tpu.memory_space<vmem>>, vector<2x1x128xf32>
    tpu.vector_store %arg14[%c0_50, %c0_51, %c0_52], %115 {strides = array<i32>} : memref<2x1x128xf32, #tpu.memory_space<vmem>>, vector<2x1x128xf32>,
    return
  }
  func.func @transform_0(%arg0: i32) -> (i32, i32, i32) {
    %c0_i32 = arith.constant 0 : i32
    %c0_i32_0 = arith.constant 0 : i32
    %c0_i32_1 = arith.constant 0 : i32
    return %arg0, %c0_i32, %c0_i32_0 : i32, i32, i32
  }
  func.func @transform_1(%arg0: i32) -> (i32, i32) {
    %c0_i32 = arith.constant 0 : i32
    %c0_i32_0 = arith.constant 0 : i32
    %c0_i32_1 = arith.constant 0 : i32
    return %c0_i32, %c0_i32_0 : i32, i32
  }
  func.func @transform_2(%arg0: i32) -> (i32, i32) {
    %c0_i32 = arith.constant 0 : i32
    %c0_i32_0 = arith.constant 0 : i32
    %c0_i32_1 = arith.constant 0 : i32
    return %c0_i32, %c0_i32_0 : i32, i32
  }
  func.func @transform_3(%arg0: i32) -> (i32, i32) {
    %c0_i32 = arith.constant 0 : i32
    %c0_i32_0 = arith.constant 0 : i32
    %c0_i32_1 = arith.constant 0 : i32
    return %c0_i32, %c0_i32_0 : i32, i32
  }
  func.func @transform_4(%arg0: i32) -> (i32, i32) {
    %c0_i32 = arith.constant 0 : i32
    %c0_i32_0 = arith.constant 0 : i32
    %c0_i32_1 = arith.constant 0 : i32
    return %c0_i32, %c0_i32_0 : i32, i32
  }
  func.func @transform_5(%arg0: i32) -> (i32, i32) {
    %c0_i32 = arith.constant 0 : i32
    %c0_i32_0 = arith.constant 0 : i32
    %c0_i32_1 = arith.constant 0 : i32
    return %c0_i32, %c0_i32_0 : i32, i32
  }
  func.func @transform_6(%arg0: i32) -> (i32, i32) {
    %c0_i32 = arith.constant 0 : i32
    %c0_i32_0 = arith.constant 0 : i32
    %c0_i32_1 = arith.constant 0 : i32
    return %c0_i32, %c0_i32_0 : i32, i32
  }
  func.func @transform_7(%arg0: i32) -> (i32, i32) {
    %c0_i32 = arith.constant 0 : i32
    %c0_i32_0 = arith.constant 0 : i32
    %c0_i32_1 = arith.constant 0 : i32
    return %c0_i32, %c0_i32_0 : i32, i32
  }
  func.func @transform_8(%arg0: i32) -> (i32, i32) {
    %c0_i32 = arith.constant 0 : i32
    %c0_i32_0 = arith.constant 0 : i32
    %c0_i32_1 = arith.constant 0 : i32
    return %c0_i32, %c0_i32_0 : i32, i32
  }
  func.func @transform_9(%arg0: i32) -> (i32, i32) {
    %c0_i32 = arith.constant 0 : i32
    %c0_i32_0 = arith.constant 0 : i32
    %c0_i32_1 = arith.constant 0 : i32
    return %c0_i32, %c0_i32_0 : i32, i32
  }
  func.func @transform_10(%arg0: i32) -> (i32, i32) {
    %c0_i32 = arith.constant 0 : i32
    %c0_i32_0 = arith.constant 0 : i32
    %c0_i32_1 = arith.constant 0 : i32
    return %c0_i32, %c0_i32_0 : i32, i32
  }
  func.func @transform_11(%arg0: i32) -> (i32, i32) {
    %c0_i32 = arith.constant 0 : i32
    %c0_i32_0 = arith.constant 0 : i32
    %c0_i32_1 = arith.constant 0 : i32
    return %c0_i32, %c0_i32_0 : i32, i32
  }
  func.func @transform_12(%arg0: i32) -> (i32, i32) {
    %c0_i32 = arith.constant 0 : i32
    %c0_i32_0 = arith.constant 0 : i32
    %c0_i32_1 = arith.constant 0 : i32
    return %c0_i32, %c0_i32_0 : i32, i32
  }
  func.func @transform_13(%arg0: i32) -> (i32, i32, i32) {
    %c0_i32 = arith.constant 0 : i32
    %c0_i32_0 = arith.constant 0 : i32
    %c0_i32_1 = arith.constant 0 : i32
    return %arg0, %c0_i32, %c0_i32_0 : i32, i32, i32
  }
}

</mosaic_0001>

<llo_original>
// kernel: _lambda_.1
$region0: #{_lambda_.1}
  #allocation0 [shape = 'u32[]', space=smem, size = 0x4, offset = 0x4, fixed_abs, tag = 'smem constant byte address 0x4 - core index']
  #allocation1 [shape = 'u32[144,128]{1,0:T(1,128)}', space=vmem, size = 0x12000, scoped, tag = 'internal scratch']
  %s0 = inlined_call_operand.vmem [shape: f32[2,16,8], index: 0, kind: input, shape index: {}]
  %s1 = inlined_call_operand.hbm [shape: f32[128,128], index: 1, kind: input, shape index: {}]
  %s2 = inlined_call_operand.vmem [shape: f32[1,128], index: 2, kind: input, shape index: {}]
  %s3 = inlined_call_operand.hbm [shape: f32[128,128], index: 3, kind: input, shape index: {}]
  %s4 = inlined_call_operand.vmem [shape: f32[1,128], index: 4, kind: input, shape index: {}]
  %s5 = inlined_call_operand.hbm [shape: f32[128,128], index: 5, kind: input, shape index: {}]
  %s6 = inlined_call_operand.vmem [shape: f32[1,128], index: 6, kind: input, shape index: {}]
  %s7 = inlined_call_operand.hbm [shape: f32[128,128], index: 7, kind: input, shape index: {}]
  %s8 = inlined_call_operand.vmem [shape: f32[1,128], index: 8, kind: input, shape index: {}]
  %s9 = inlined_call_operand.hbm [shape: f32[128,128], index: 9, kind: input, shape index: {}]
  %s10 = inlined_call_operand.vmem [shape: f32[1,128], index: 10, kind: input, shape index: {}]
  %s11 = inlined_call_operand.vmem [shape: f32[128,128], index: 11, kind: input, shape index: {}]
  %s12 = inlined_call_operand.vmem [shape: f32[1,128], index: 12, kind: input, shape index: {}]
  %s13 = inlined_call_operand.vmem [shape: f32[2,1,128], index: 13, kind: output, shape index: {}]
  %s14 = sld [smem:[#allocation0]]
  $region82: #{_lambda_.1} parent=0
    _
  %s16 = ssub.s32 1, %s14
  %s17 = scalar_select 0, %s16, %s14
  $region1: #{_lambda_.1} parent=0
    #allocation2 [shape = 'u8[65536]{0}', space=vmem, size = 0x10000, scoped, tag = 'input window, operand 1, single buffered']
    #allocation3 [shape = 's32[1]{0}', space=sflag, size = 0x4, scoped, tag = 'scoped memory for _lambda_.1']
    #allocation4 [shape = 'u8[65536]{0}', space=vmem, size = 0x10000, scoped, tag = 'input window, operand 3, single buffered']
    #allocation5 [shape = 's32[1]{0}', space=sflag, size = 0x4, scoped, tag = 'scoped memory for _lambda_.1']
    #allocation6 [shape = 'u8[65536]{0}', space=vmem, size = 0x10000, scoped, tag = 'input window, operand 5, single buffered']
    #allocation7 [shape = 'u8[65536]{0}', space=vmem, size = 0x10000, scoped, tag = 'input window, operand 7, single buffered']
    #allocation8 [shape = 's32[1]{0}', space=sflag, size = 0x4, scoped, tag = 'scoped memory for _lambda_.1']
    #allocation9 [shape = 'u8[65536]{0}', space=vmem, size = 0x10000, scoped, tag = 'input window, operand 9, single buffered']
    %18 = vsyncpa [#allocation3], 0
    %19 = vsyncpa [#allocation5], 0
    %20 = vsyncpa [#allocation8], 0
    // Predicated region
    $region2: #{_lambda_.1} parent=1 // pred_check
      _
    $region3: #{_lambda_.1} parent=1 // pred_check_branch
      %22 = sbr.rel (0) target = $region5
    $region4: #{_lambda_.1} parent=1 // pred_region
      _
    $region5: #{_lambda_.1} parent=1 // pred_fallthru
      _
    // Predicated region
    $region6: #{_lambda_.1} parent=1 // pred_check
      _
    $region7: #{_lambda_.1} parent=1 // pred_check_branch
      %24 = sbr.rel (0) target = $region9
    $region8: #{_lambda_.1} parent=1 // pred_region
      %s26 = ssub.s32 2048, 2048
      %27 = vsyncadd [#allocation3], %s26
      %s28 = sshll.u32 [#allocation2], 4
      %s29 = int_to_ptr.vmem [resolvable:$true] %s28
      %34 = dma.hbm_to_vmem [thread:$0]  %s1, 2048, %s29, [#allocation3], 128, 128, 8
    $region9: #{_lambda_.1} parent=1 // pred_fallthru
      _
    // Predicated region
    $region10: #{_lambda_.1} parent=1 // pred_check
      _
    $region11: #{_lambda_.1} parent=1 // pred_check_branch
      %36 = sbr.rel (0) target = $region13
    $region12: #{_lambda_.1} parent=1 // pred_region
      _
    $region13: #{_lambda_.1} parent=1 // pred_fallthru
      _
    // Predicated region
    $region14: #{_lambda_.1} parent=1 // pred_check
      _
    $region15: #{_lambda_.1} parent=1 // pred_check_branch
      %38 = sbr.rel (0) target = $region17
    $region16: #{_lambda_.1} parent=1 // pred_region
      %s40 = ssub.s32 2048, 2048
      %41 = vsyncadd [#allocation5], %s40
      %s42 = sshll.u32 [#allocation4], 4
      %s43 = int_to_ptr.vmem [resolvable:$true] %s42
      %48 = dma.hbm_to_vmem [thread:$0]  %s3, 2048, %s43, [#allocation5], 128, 128, 8
    $region17: #{_lambda_.1} parent=1 // pred_fallthru
      _
    // Predicated region
    $region18: #{_lambda_.1} parent=1 // pred_check
      _
    $region19: #{_lambda_.1} parent=1 // pred_check_branch
      %50 = sbr.rel (0) target = $region21
    $region20: #{_lambda_.1} parent=1 // pred_region
      _
    $region21: #{_lambda_.1} parent=1 // pred_fallthru
      _
    // Predicated region
    $region22: #{_lambda_.1} parent=1 // pred_check
      _
    $region23: #{_lambda_.1} parent=1 // pred_check_branch
      %52 = sbr.rel (0) target = $region25
    $region24: #{_lambda_.1} parent=1 // pred_region
      %s54 = ssub.s32 2048, 2048
      %55 = vsyncadd [#allocation5], %s54
      %s56 = sshll.u32 [#allocation6], 4
      %s57 = int_to_ptr.vmem [resolvable:$true] %s56
      %62 = dma.hbm_to_vmem [thread:$0]  %s5, 2048, %s57, [#allocation5], 128, 128, 8
    $region25: #{_lambda_.1} parent=1 // pred_fallthru
      _
    // Predicated region
    $region26: #{_lambda_.1} parent=1 // pred_check
      _
    $region27: #{_lambda_.1} parent=1 // pred_check_branch
      %64 = sbr.rel (0) target = $region29
    $region28: #{_lambda_.1} parent=1 // pred_region
      _
    $region29: #{_lambda_.1} parent=1 // pred_fallthru
      _
    // Predicated region
    $region30: #{_lambda_.1} parent=1 // pred_check
      _
    $region31: #{_lambda_.1} parent=1 // pred_check_branch
      %66 = sbr.rel (0) target = $region33
    $region32: #{_lambda_.1} parent=1 // pred_region
      %s68 = ssub.s32 2048, 2048
      %69 = vsyncadd [#allocation8], %s68
      %s70 = sshll.u32 [#allocation7], 4
      %s71 = int_to_ptr.vmem [resolvable:$true] %s70
      %76 = dma.hbm_to_vmem [thread:$0]  %s7, 2048, %s71, [#allocation8], 128, 128, 8
    $region33: #{_lambda_.1} parent=1 // pred_fallthru
      _
    // Predicated region
    $region34: #{_lambda_.1} parent=1 // pred_check
      _
    $region35: #{_lambda_.1} parent=1 // pred_check_branch
      %78 = sbr.rel (0) target = $region37
    $region36: #{_lambda_.1} parent=1 // pred_region
      _
    $region37: #{_lambda_.1} parent=1 // pred_fallthru
      _
    // Predicated region
    $region38: #{_lambda_.1} parent=1 // pred_check
      _
    $region39: #{_lambda_.1} parent=1 // pred_check_branch
      %80 = sbr.rel (0) target = $region41
    $region40: #{_lambda_.1} parent=1 // pred_region
      %s82 = ssub.s32 2048, 2048
      %83 = vsyncadd [#allocation8], %s82
      %s84 = sshll.u32 [#allocation9], 4
      %s85 = int_to_ptr.vmem [resolvable:$true] %s84
      %90 = dma.hbm_to_vmem [thread:$0]  %s9, 2048, %s85, [#allocation8], 128, 128, 8
    $region41: #{_lambda_.1} parent=1 // pred_fallthru
      _
    // Predicated region
    $region42: #{_lambda_.1} parent=1 // pred_check
      _
    $region43: #{_lambda_.1} parent=1 // pred_check_branch
      %92 = sbr.rel (0) target = $region45
    $region44: #{_lambda_.1} parent=1 // pred_region
      _
    $region45: #{_lambda_.1} parent=1 // pred_fallthru
      _
    // Predicated region
    $region46: #{_lambda_.1} parent=1 // pred_check
      _
    $region47: #{_lambda_.1} parent=1 // pred_check_branch
      %94 = sbr.rel (0) target = $region49
    $region48: #{_lambda_.1} parent=1 // pred_region
      _
    $region49: #{_lambda_.1} parent=1 // pred_fallthru
      _
    // Predicated region
    $region50: #{_lambda_.1} parent=1 // pred_check
      _
    $region51: #{_lambda_.1} parent=1 // pred_check_branch
      %96 = sbr.rel (0) target = $region53
    $region52: #{_lambda_.1} parent=1 // pred_region
      _
    $region53: #{_lambda_.1} parent=1 // pred_fallthru
      _
    // Predicated region
    $region54: #{_lambda_.1} parent=1 // pred_check
      _
    $region55: #{_lambda_.1} parent=1 // pred_check_branch
      %98 = sbr.rel (0) target = $region57
    $region56: #{_lambda_.1} parent=1 // pred_region
      %99 = dma.done [#allocation3], 2048
    $region57: #{_lambda_.1} parent=1 // pred_fallthru
      _
    // Predicated region
    $region58: #{_lambda_.1} parent=1 // pred_check
      _
    $region59: #{_lambda_.1} parent=1 // pred_check_branch
      %101 = sbr.rel (0) target = $region61
    $region60: #{_lambda_.1} parent=1 // pred_region
      %102 = dma.done [#allocation5], 2048
    $region61: #{_lambda_.1} parent=1 // pred_fallthru
      _
    // Predicated region
    $region62: #{_lambda_.1} parent=1 // pred_check
      _
    $region63: #{_lambda_.1} parent=1 // pred_check_branch
      %104 = sbr.rel (0) target = $region65
    $region64: #{_lambda_.1} parent=1 // pred_region
      %105 = dma.done [#allocation5], 2048
    $region65: #{_lambda_.1} parent=1 // pred_fallthru
      _
    // Predicated region
    $region66: #{_lambda_.1} parent=1 // pred_check
      _
    $region67: #{_lambda_.1} parent=1 // pred_check_branch
      %107 = sbr.rel (0) target = $region69
    $region68: #{_lambda_.1} parent=1 // pred_region
      %108 = dma.done [#allocation8], 2048
    $region69: #{_lambda_.1} parent=1 // pred_fallthru
      _
    // Predicated region
    $region70: #{_lambda_.1} parent=1 // pred_check
      _
    $region71: #{_lambda_.1} parent=1 // pred_check_branch
      %110 = sbr.rel (0) target = $region73
    $region72: #{_lambda_.1} parent=1 // pred_region
      %111 = dma.done [#allocation8], 2048
    $region73: #{_lambda_.1} parent=1 // pred_fallthru
      _
    %v112 = vld [vmem:[%s0] sm:$0xff]
    %v113 = vld [vmem:[%s0 + $0x8] sm:$0xff]
    %v114 = vld [vmem:[%s0 + $0x10] sm:$0xff]
    %v115 = vld [vmem:[%s0 + $0x18] sm:$0xff]
    %vm116 = vcmask 64512
    %v117 = vsel %vm116, %v112, 0.0
    %v118 = vsel %vm116, %v113, 0.0
    %v119 = vsel %vm116, %v114, 0.0
    %v120 = vsel %vm116, %v115, 0.0
    %vm125 = vcmask 1042432
    %v126 = vrot.slane %v117, 5
    %v127 = vrot.slane %v118, 5
    %v128 = vsel %vm125, %v126, %v127
    %v129 = vrot.slane %v119, 5
    %v130 = vrot.slane %v120, 5
    %v131 = vsel %vm125, %v129, %v130
    %v136 = vsel %vm125, 0.0, %v126
    %v137 = vsel %vm125, 0.0, %v129
    %vm138 = vcmask 1041408
    %v139 = vrot.slane %v117, 6
    %v140 = vrot.slane %v118, 6
    %v141 = vsel %vm138, %v139, %v140
    %v142 = vrot.slane %v119, 6
    %v143 = vrot.slane %v120, 6
    %v144 = vsel %vm138, %v142, %v143
    %v147 = vsel %vm138, 0.0, %v139
    %v148 = vsel %vm138, 0.0, %v142
    %vm149 = vcmask 1040384
    %v150 = vrot.slane %v117, 7
    %v151 = vrot.slane %v118, 7
    %v152 = vsel %vm149, %v150, %v151
    %v153 = vrot.slane %v119, 7
    %v154 = vrot.slane %v120, 7
    %v155 = vsel %vm149, %v153, %v154
    %v158 = vsel %vm149, 0.0, %v150
    %v159 = vsel %vm149, 0.0, %v153
    %162 = vrot.lane.b32.xlu0 %v147, 32
    %v163 = vpop.permute.xlu0 %162
    %164 = vrot.lane.b32.xlu0 %v141, 32
    %v165 = vpop.permute.xlu0 %164
    %166 = vrot.lane.b32.xlu0 %v148, 32
    %v167 = vpop.permute.xlu0 %166
    %168 = vrot.lane.b32.xlu0 %v144, 32
    %v169 = vpop.permute.xlu0 %168
    %176 = vrot.lane.b32.xlu0 %v158, 64
    %v177 = vpop.permute.xlu0 %176
    %178 = vrot.lane.b32.xlu0 %v152, 64
    %v179 = vpop.permute.xlu0 %178
    %180 = vrot.lane.b32.xlu0 %v159, 64
    %v181 = vpop.permute.xlu0 %180
    %182 = vrot.lane.b32.xlu0 %v155, 64
    %v183 = vpop.permute.xlu0 %182
    %188 = vrot.lane.b32.xlu0 %v117, 96
    %v189 = vpop.permute.xlu0 %188
    %190 = vrot.lane.b32.xlu0 %v118, 96
    %v191 = vpop.permute.xlu0 %190
    %192 = vrot.lane.b32.xlu0 %v119, 96
    %v193 = vpop.permute.xlu0 %192
    %194 = vrot.lane.b32.xlu0 %v120, 96
    %v195 = vpop.permute.xlu0 %194
    %vm200 = vcmask 261120
    %v201 = vsel %vm200, %v136, %v163
    %v202 = vsel %vm200, %v128, %v165
    %v203 = vsel %vm200, %v137, %v167
    %v204 = vsel %vm200, %v131, %v169
    %vm205 = vcmask 523264
    %v206 = vsel %vm205, %v201, %v177
    %v207 = vsel %vm205, %v202, %v179
    %v208 = vsel %vm205, %v203, %v181
    %v209 = vsel %vm205, %v204, %v183
    %vm210 = vcmask 785408
    %v211 = vsel %vm210, %v206, %v189
    %v212 = vsel %vm210, %v207, %v191
    %v213 = vsel %vm210, %v208, %v193
    %v214 = vsel %vm210, %v209, %v195
    %v215 = vld [vmem:[#allocation2] sm:$0xff]
    %v216 = vld [vmem:[#allocation2 + $0x8] sm:$0xff]
    %v217 = vld [vmem:[#allocation2 + $0x10] sm:$0xff]
    %v218 = vld [vmem:[#allocation2 + $0x18] sm:$0xff]
    %v219 = vld [vmem:[#allocation2 + $0x20] sm:$0xff]
    %v220 = vld [vmem:[#allocation2 + $0x28] sm:$0xff]
    %v221 = vld [vmem:[#allocation2 + $0x30] sm:$0xff]
    %v222 = vld [vmem:[#allocation2 + $0x38] sm:$0xff]
    %v223 = vld [vmem:[#allocation2 + $0x40] sm:$0xff]
    %v224 = vld [vmem:[#allocation2 + $0x48] sm:$0xff]
    %v225 = vld [vmem:[#allocation2 + $0x50] sm:$0xff]
    %v226 = vld [vmem:[#allocation2 + $0x58] sm:$0xff]
    %v227 = vld [vmem:[#allocation2 + $0x60] sm:$0xff]
    %v228 = vld [vmem:[#allocation2 + $0x68] sm:$0xff]
    %v229 = vld [vmem:[#allocation2 + $0x70] sm:$0xff]
    %v230 = vld [vmem:[#allocation2 + $0x78] sm:$0xff]
    %v231 = vld [vmem:[%s2] sm:$0x1]
    %v233 = vlaneseq
    %v234 = vshrl.u32 %v233, 7
    %v235 = vsub.s32 0, %v234
    %v236 = vrot.slane %v231, %v235
    %238 = vmatprep.subr.mxu0 0.0
    %239 = vmatpush1.msra.mxu0 %v215
    %240 = vmatprep.subr.mxu0 0.0
    %241 = vmatpush1.msra.mxu0 %v216
    %242 = vmatprep.subr.mxu0 0.0
    %243 = vmatpush1.msra.mxu0 %v217
    %244 = vmatprep.subr.mxu0 0.0
    %245 = vmatpush1.msra.mxu0 %v218
    %246 = vmatprep.subr.mxu0 0.0
    %247 = vmatpush1.msra.mxu0 %v219
    %248 = vmatprep.subr.mxu0 0.0
    %249 = vmatpush1.msra.mxu0 %v220
    %250 = vmatprep.subr.mxu0 0.0
    %251 = vmatpush1.msra.mxu0 %v221
    %252 = vmatprep.subr.mxu0 0.0
    %253 = vmatpush1.msra.mxu0 %v222
    %254 = vmatprep.subr.mxu0 0.0
    %255 = vmatpush1.msra.mxu0 %v223
    %256 = vmatprep.subr.mxu0 0.0
    %257 = vmatpush1.msra.mxu0 %v224
    %258 = vmatprep.subr.mxu0 0.0
    %259 = vmatpush1.msra.mxu0 %v225
    %260 = vmatprep.subr.mxu0 0.0
    %261 = vmatpush1.msra.mxu0 %v226
    %262 = vmatprep.subr.mxu0 0.0
    %263 = vmatpush1.msra.mxu0 %v227
    %264 = vmatprep.subr.mxu0 0.0
    %265 = vmatpush1.msra.mxu0 %v228
    %266 = vmatprep.subr.mxu0 0.0
    %267 = vmatpush1.msra.mxu0 %v229
    %268 = vmatprep.subr.mxu0 0.0
    %269 = vmatpush1.msra.mxu0 %v230
    %270 = vmatprep.subr.mxu0 0.0
    %271 = vmatpush1.msra.mxu0 0.0
    %272 = vmatprep.subr.mxu0 0.0
    %273 = vmatpush1.msra.mxu0 0.0
    %274 = vmatprep.subr.mxu0 0.0
    %275 = vmatpush1.msra.mxu0 0.0
    %276 = vmatprep.subr.mxu0 0.0
    %277 = vmatpush1.msra.mxu0 0.0
    %278 = vmatprep.subr.mxu0 0.0
    %279 = vmatpush1.msra.mxu0 0.0
    %280 = vmatprep.subr.mxu0 0.0
    %281 = vmatpush1.msra.mxu0 0.0
    %282 = vmatprep.subr.mxu0 0.0
    %283 = vmatpush1.msra.mxu0 0.0
    %284 = vmatprep.subr.mxu0 0.0
    %285 = vmatpush1.msra.mxu0 0.0
    %286 = vmatprep.subr.mxu0 0.0
    %287 = vmatpush1.msra.mxu0 0.0
    %288 = vmatprep.subr.mxu0 0.0
    %289 = vmatpush1.msra.mxu0 0.0
    %290 = vmatprep.subr.mxu0 0.0
    %291 = vmatpush1.msra.mxu0 0.0
    %292 = vmatprep.subr.mxu0 0.0
    %293 = vmatpush1.msra.mxu0 0.0
    %294 = vmatprep.subr.mxu0 0.0
    %295 = vmatpush1.msra.mxu0 0.0
    %296 = vmatprep.subr.mxu0 0.0
    %297 = vmatpush1.msra.mxu0 0.0
    %298 = vmatprep.subr.mxu0 0.0
    %299 = vmatpush1.msra.mxu0 0.0
    %300 = vmatprep.subr.mxu0 0.0
    %301 = vmatpush1.msra.mxu0 0.0
    %302 = vmatprep.mubr.f32.mxu0 0.0
    %303 = vmatmul.mubr.f32.gmra.mrb[0].mxu0 %v211
    %v304 = vpop.f32.mrb[0].mxu0
    %v305 = vadd.f32 %v236, %v304
    %v306 = vpop.f32.mrb[0].mxu0
    %307 = vmatprep.mubr.f32.mxu0 0.0
    %308 = vmatmul.mubr.f32.gmra.mrb[0].mxu0 %v212
    %v309 = vpop.f32.mrb[0].mxu0
    %v310 = vadd.f32 %v236, %v309
    %v311 = vpop.f32.mrb[0].mxu0
    %312 = vmatprep.mubr.f32.mxu0 0.0
    %313 = vmatmul.mubr.f32.gmra.mrb[0].mxu0 %v213
    %v314 = vpop.f32.mrb[0].mxu0
    %v315 = vadd.f32 %v236, %v314
    %v316 = vpop.f32.mrb[0].mxu0
    %317 = vmatprep.mubr.f32.mxu0 0.0
    %318 = vmatmul.mubr.f32.gmra.mrb[0].mxu0 %v214
    %v319 = vpop.f32.mrb[0].mxu0
    %v320 = vadd.f32 %v236, %v319
    %v321 = vpop.f32.mrb[0].mxu0
    %322 = vdwg.mxu0
    %v323 = vmax.f32 %v305, 0.0
    %v324 = vmax.f32 %v310, 0.0
    %v325 = vmax.f32 %v315, 0.0
    %v326 = vmax.f32 %v320, 0.0
    %v331 = vrot.slane %v323, 5
    %v332 = vrot.slane %v324, 5
    %v333 = vsel %vm125, %v331, %v332
    %v334 = vrot.slane %v325, 5
    %v335 = vrot.slane %v326, 5
    %v336 = vsel %vm125, %v334, %v335
    %v341 = vsel %vm125, 0.0, %v331
    %v342 = vsel %vm125, 0.0, %v334
    %v343 = vrot.slane %v323, 6
    %v344 = vrot.slane %v324, 6
    %v345 = vsel %vm138, %v343, %v344
    %v346 = vrot.slane %v325, 6
    %v347 = vrot.slane %v326, 6
    %v348 = vsel %vm138, %v346, %v347
    %v351 = vsel %vm138, 0.0, %v343
    %v352 = vsel %vm138, 0.0, %v346
    %v353 = vrot.slane %v323, 7
    %v354 = vrot.slane %v324, 7
    %v355 = vsel %vm149, %v353, %v354
    %v356 = vrot.slane %v325, 7
    %v357 = vrot.slane %v326, 7
    %v358 = vsel %vm149, %v356, %v357
    %v361 = vsel %vm149, 0.0, %v353
    %v362 = vsel %vm149, 0.0, %v356
    %365 = vrot.lane.b32.xlu0 %v351, 32
    %v366 = vpop.permute.xlu0 %365
    %367 = vrot.lane.b32.xlu0 %v345, 32
    %v368 = vpop.permute.xlu0 %367
    %369 = vrot.lane.b32.xlu0 %v352, 32
    %v370 = vpop.permute.xlu0 %369
    %371 = vrot.lane.b32.xlu0 %v348, 32
    %v372 = vpop.permute.xlu0 %371
    %379 = vrot.lane.b32.xlu0 %v361, 64
    %v380 = vpop.permute.xlu0 %379
    %381 = vrot.lane.b32.xlu0 %v355, 64
    %v382 = vpop.permute.xlu0 %381
    %383 = vrot.lane.b32.xlu0 %v362, 64
    %v384 = vpop.permute.xlu0 %383
    %385 = vrot.lane.b32.xlu0 %v358, 64
    %v386 = vpop.permute.xlu0 %385
    %391 = vrot.lane.b32.xlu0 %v323, 96
    %v392 = vpop.permute.xlu0 %391
    %393 = vrot.lane.b32.xlu0 %v324, 96
    %v394 = vpop.permute.xlu0 %393
    %395 = vrot.lane.b32.xlu0 %v325, 96
    %v396 = vpop.permute.xlu0 %395
    %397 = vrot.lane.b32.xlu0 %v326, 96
    %v398 = vpop.permute.xlu0 %397
    %v403 = vsel %vm200, %v341, %v366
    %v404 = vsel %vm200, %v333, %v368
    %v405 = vsel %vm200, %v342, %v370
    %v406 = vsel %vm200, %v336, %v372
    %v407 = vsel %vm205, %v403, %v380
    %v408 = vsel %vm205, %v404, %v382
    %v409 = vsel %vm205, %v405, %v384
    %v410 = vsel %vm205, %v406, %v386
    %v411 = vsel %vm210, %v407, %v392
    %v412 = vsel %vm210, %v408, %v394
    %v413 = vsel %vm210, %v409, %v396
    %v414 = vsel %vm210, %v410, %v398
    %v415 = vld [vmem:[#allocation4] sm:$0xff]
    %v416 = vld [vmem:[#allocation4 + $0x8] sm:$0xff]
    %v417 = vld [vmem:[#allocation4 + $0x10] sm:$0xff]
    %v418 = vld [vmem:[#allocation4 + $0x18] sm:$0xff]
    %v419 = vld [vmem:[#allocation4 + $0x20] sm:$0xff]
    %v420 = vld [vmem:[#allocation4 + $0x28] sm:$0xff]
    %v421 = vld [vmem:[#allocation4 + $0x30] sm:$0xff]
    %v422 = vld [vmem:[#allocation4 + $0x38] sm:$0xff]
    %v423 = vld [vmem:[#allocation4 + $0x40] sm:$0xff]
    %v424 = vld [vmem:[#allocation4 + $0x48] sm:$0xff]
    %v425 = vld [vmem:[#allocation4 + $0x50] sm:$0xff]
    %v426 = vld [vmem:[#allocation4 + $0x58] sm:$0xff]
    %v427 = vld [vmem:[#allocation4 + $0x60] sm:$0xff]
    %v428 = vld [vmem:[#allocation4 + $0x68] sm:$0xff]
    %v429 = vld [vmem:[#allocation4 + $0x70] sm:$0xff]
    %v430 = vld [vmem:[#allocation4 + $0x78] sm:$0xff]
    %v431 = vld [vmem:[%s4] sm:$0x1]
    %v433 = vlaneseq
    %v434 = vshrl.u32 %v433, 7
    %v435 = vsub.s32 0, %v434
    %v436 = vrot.slane %v431, %v435
    %438 = vmatprep.subr.mxu0 0.0
    %439 = vmatpush1.msra.mxu0 %v415
    %440 = vmatprep.subr.mxu0 0.0
    %441 = vmatpush1.msra.mxu0 %v416
    %442 = vmatprep.subr.mxu0 0.0
    %443 = vmatpush1.msra.mxu0 %v417
    %444 = vmatprep.subr.mxu0 0.0
    %445 = vmatpush1.msra.mxu0 %v418
    %446 = vmatprep.subr.mxu0 0.0
    %447 = vmatpush1.msra.mxu0 %v419
    %448 = vmatprep.subr.mxu0 0.0
    %449 = vmatpush1.msra.mxu0 %v420
    %450 = vmatprep.subr.mxu0 0.0
    %451 = vmatpush1.msra.mxu0 %v421
    %452 = vmatprep.subr.mxu0 0.0
    %453 = vmatpush1.msra.mxu0 %v422
    %454 = vmatprep.subr.mxu0 0.0
    %455 = vmatpush1.msra.mxu0 %v423
    %456 = vmatprep.subr.mxu0 0.0
    %457 = vmatpush1.msra.mxu0 %v424
    %458 = vmatprep.subr.mxu0 0.0
    %459 = vmatpush1.msra.mxu0 %v425
    %460 = vmatprep.subr.mxu0 0.0
    %461 = vmatpush1.msra.mxu0 %v426
    %462 = vmatprep.subr.mxu0 0.0
    %463 = vmatpush1.msra.mxu0 %v427
    %464 = vmatprep.subr.mxu0 0.0
    %465 = vmatpush1.msra.mxu0 %v428
    %466 = vmatprep.subr.mxu0 0.0
    %467 = vmatpush1.msra.mxu0 %v429
    %468 = vmatprep.subr.mxu0 0.0
    %469 = vmatpush1.msra.mxu0 %v430
    %470 = vmatprep.subr.mxu0 0.0
    %471 = vmatpush1.msra.mxu0 0.0
    %472 = vmatprep.subr.mxu0 0.0
    %473 = vmatpush1.msra.mxu0 0.0
    %474 = vmatprep.subr.mxu0 0.0
    %475 = vmatpush1.msra.mxu0 0.0
    %476 = vmatprep.subr.mxu0 0.0
    %477 = vmatpush1.msra.mxu0 0.0
    %478 = vmatprep.subr.mxu0 0.0
    %479 = vmatpush1.msra.mxu0 0.0
    %480 = vmatprep.subr.mxu0 0.0
    %481 = vmatpush1.msra.mxu0 0.0
    %482 = vmatprep.subr.mxu0 0.0
    %483 = vmatpush1.msra.mxu0 0.0
    %484 = vmatprep.subr.mxu0 0.0
    %485 = vmatpush1.msra.mxu0 0.0
    %486 = vmatprep.subr.mxu0 0.0
    %487 = vmatpush1.msra.mxu0 0.0
    %488 = vmatprep.subr.mxu0 0.0
    %489 = vmatpush1.msra.mxu0 0.0
    %490 = vmatprep.subr.mxu0 0.0
    %491 = vmatpush1.msra.mxu0 0.0
    %492 = vmatprep.subr.mxu0 0.0
    %493 = vmatpush1.msra.mxu0 0.0
    %494 = vmatprep.subr.mxu0 0.0
    %495 = vmatpush1.msra.mxu0 0.0
    %496 = vmatprep.subr.mxu0 0.0
    %497 = vmatpush1.msra.mxu0 0.0
    %498 = vmatprep.subr.mxu0 0.0
    %499 = vmatpush1.msra.mxu0 0.0
    %500 = vmatprep.subr.mxu0 0.0
    %501 = vmatpush1.msra.mxu0 0.0
    %502 = vmatprep.mubr.f32.mxu0 0.0
    %503 = vmatmul.mubr.f32.gmra.mrb[0].mxu0 %v411
    %v504 = vpop.f32.mrb[0].mxu0
    %v505 = vadd.f32 %v436, %v504
    %v506 = vpop.f32.mrb[0].mxu0
    %507 = vmatprep.mubr.f32.mxu0 0.0
    %508 = vmatmul.mubr.f32.gmra.mrb[0].mxu0 %v412
    %v509 = vpop.f32.mrb[0].mxu0
    %v510 = vadd.f32 %v436, %v509
    %v511 = vpop.f32.mrb[0].mxu0
    %512 = vmatprep.mubr.f32.mxu0 0.0
    %513 = vmatmul.mubr.f32.gmra.mrb[0].mxu0 %v413
    %v514 = vpop.f32.mrb[0].mxu0
    %v515 = vadd.f32 %v436, %v514
    %v516 = vpop.f32.mrb[0].mxu0
    %517 = vmatprep.mubr.f32.mxu0 0.0
    %518 = vmatmul.mubr.f32.gmra.mrb[0].mxu0 %v414
    %v519 = vpop.f32.mrb[0].mxu0
    %v520 = vadd.f32 %v436, %v519
    %v521 = vpop.f32.mrb[0].mxu0
    %522 = vdwg.mxu0
    %v523 = vmax.f32 %v505, 0.0
    %v524 = vmax.f32 %v510, 0.0
    %v525 = vmax.f32 %v515, 0.0
    %v526 = vmax.f32 %v520, 0.0
    %v527 = vld [vmem:[#allocation6] sm:$0xff]
    %v528 = vld [vmem:[#allocation6 + $0x8] sm:$0xff]
    %v529 = vld [vmem:[#allocation6 + $0x10] sm:$0xff]
    %v530 = vld [vmem:[#allocation6 + $0x18] sm:$0xff]
    %v531 = vld [vmem:[#allocation6 + $0x20] sm:$0xff]
    %v532 = vld [vmem:[#allocation6 + $0x28] sm:$0xff]
    %v533 = vld [vmem:[#allocation6 + $0x30] sm:$0xff]
    %v534 = vld [vmem:[#allocation6 + $0x38] sm:$0xff]
    %v535 = vld [vmem:[#allocation6 + $0x40] sm:$0xff]
    %v536 = vld [vmem:[#allocation6 + $0x48] sm:$0xff]
    %v537 = vld [vmem:[#allocation6 + $0x50] sm:$0xff]
    %v538 = vld [vmem:[#allocation6 + $0x58] sm:$0xff]
    %v539 = vld [vmem:[#allocation6 + $0x60] sm:$0xff]
    %v540 = vld [vmem:[#allocation6 + $0x68] sm:$0xff]
    %v541 = vld [vmem:[#allocation6 + $0x70] sm:$0xff]
    %v542 = vld [vmem:[#allocation6 + $0x78] sm:$0xff]
    %v543 = vld [vmem:[%s6] sm:$0x1]
    %v545 = vlaneseq
    %v546 = vshrl.u32 %v545, 7
    %v547 = vsub.s32 0, %v546
    %v548 = vrot.slane %v543, %v547
    %550 = vmatprep.subr.mxu0 0.0
    %551 = vmatpush1.msra.mxu0 %v527
    %552 = vmatprep.subr.mxu0 0.0
    %553 = vmatpush1.msra.mxu0 %v528
    %554 = vmatprep.subr.mxu0 0.0
    %555 = vmatpush1.msra.mxu0 %v529
    %556 = vmatprep.subr.mxu0 0.0
    %557 = vmatpush1.msra.mxu0 %v530
    %558 = vmatprep.subr.mxu0 0.0
    %559 = vmatpush1.msra.mxu0 %v531
    %560 = vmatprep.subr.mxu0 0.0
    %561 = vmatpush1.msra.mxu0 %v532
    %562 = vmatprep.subr.mxu0 0.0
    %563 = vmatpush1.msra.mxu0 %v533
    %564 = vmatprep.subr.mxu0 0.0
    %565 = vmatpush1.msra.mxu0 %v534
    %566 = vmatprep.subr.mxu0 0.0
    %567 = vmatpush1.msra.mxu0 %v535
    %568 = vmatprep.subr.mxu0 0.0
    %569 = vmatpush1.msra.mxu0 %v536
    %570 = vmatprep.subr.mxu0 0.0
    %571 = vmatpush1.msra.mxu0 %v537
    %572 = vmatprep.subr.mxu0 0.0
    %573 = vmatpush1.msra.mxu0 %v538
    %574 = vmatprep.subr.mxu0 0.0
    %575 = vmatpush1.msra.mxu0 %v539
    %576 = vmatprep.subr.mxu0 0.0
    %577 = vmatpush1.msra.mxu0 %v540
    %578 = vmatprep.subr.mxu0 0.0
    %579 = vmatpush1.msra.mxu0 %v541
    %580 = vmatprep.subr.mxu0 0.0
    %581 = vmatpush1.msra.mxu0 %v542
    %582 = vmatprep.subr.mxu0 0.0
    %583 = vmatpush1.msra.mxu0 0.0
    %584 = vmatprep.subr.mxu0 0.0
    %585 = vmatpush1.msra.mxu0 0.0
    %586 = vmatprep.subr.mxu0 0.0
    %587 = vmatpush1.msra.mxu0 0.0
    %588 = vmatprep.subr.mxu0 0.0
    %589 = vmatpush1.msra.mxu0 0.0
    %590 = vmatprep.subr.mxu0 0.0
    %591 = vmatpush1.msra.mxu0 0.0
    %592 = vmatprep.subr.mxu0 0.0
    %593 = vmatpush1.msra.mxu0 0.0
    %594 = vmatprep.subr.mxu0 0.0
    %595 = vmatpush1.msra.mxu0 0.0
    %596 = vmatprep.subr.mxu0 0.0
    %597 = vmatpush1.msra.mxu0 0.0
    %598 = vmatprep.subr.mxu0 0.0
    %599 = vmatpush1.msra.mxu0 0.0
    %600 = vmatprep.subr.mxu0 0.0
    %601 = vmatpush1.msra.mxu0 0.0
    %602 = vmatprep.subr.mxu0 0.0
    %603 = vmatpush1.msra.mxu0 0.0
    %604 = vmatprep.subr.mxu0 0.0
    %605 = vmatpush1.msra.mxu0 0.0
    %606 = vmatprep.subr.mxu0 0.0
    %607 = vmatpush1.msra.mxu0 0.0
    %608 = vmatprep.subr.mxu0 0.0
    %609 = vmatpush1.msra.mxu0 0.0
    %610 = vmatprep.subr.mxu0 0.0
    %611 = vmatpush1.msra.mxu0 0.0
    %612 = vmatprep.subr.mxu0 0.0
    %613 = vmatpush1.msra.mxu0 0.0
    %614 = vmatprep.mubr.f32.mxu0 0.0
    %615 = vmatmul.mubr.f32.gmra.mrb[0].mxu0 %v117
    %v616 = vpop.f32.mrb[0].mxu0
    %v617 = vadd.f32 %v548, %v616
    %v618 = vpop.f32.mrb[0].mxu0
    %619 = vmatprep.mubr.f32.mxu0 0.0
    %620 = vmatmul.mubr.f32.gmra.mrb[0].mxu0 %v118
    %v621 = vpop.f32.mrb[0].mxu0
    %v622 = vadd.f32 %v548, %v621
    %v623 = vpop.f32.mrb[0].mxu0
    %624 = vmatprep.mubr.f32.mxu0 0.0
    %625 = vmatmul.mubr.f32.gmra.mrb[0].mxu0 %v119
    %v626 = vpop.f32.mrb[0].mxu0
    %v627 = vadd.f32 %v548, %v626
    %v628 = vpop.f32.mrb[0].mxu0
    %629 = vmatprep.mubr.f32.mxu0 0.0
    %630 = vmatmul.mubr.f32.gmra.mrb[0].mxu0 %v120
    %v631 = vpop.f32.mrb[0].mxu0
    %v632 = vadd.f32 %v548, %v631
    %v633 = vpop.f32.mrb[0].mxu0
    %634 = vdwg.mxu0
    %v635 = vadd.f32 %v523, %v617
    %v636 = vadd.f32 %v524, %v622
    %v637 = vadd.f32 %v525, %v627
    %v638 = vadd.f32 %v526, %v632
    %v639 = vmax.f32 %v635, 0.0
    %v640 = vmax.f32 %v636, 0.0
    %v641 = vmax.f32 %v637, 0.0
    %v642 = vmax.f32 %v638, 0.0
    %vm647 = vcmask 1045504
    %v648 = vrot.slane %v639, 2
    %v649 = vrot.slane %v640, 2
    %v650 = vsel %vm647, %v648, %v649
    %v651 = vrot.slane %v641, 2
    %v652 = vrot.slane %v642, 2
    %v653 = vsel %vm647, %v651, %v652
    %v658 = vsel %vm647, 0.0, %v648
    %v659 = vsel %vm647, 0.0, %v651
    %vm660 = vcmask 1043456
    %v661 = vrot.slane %v639, 4
    %v662 = vrot.slane %v640, 4
    %v663 = vsel %vm660, %v661, %v662
    %v664 = vrot.slane %v641, 4
    %v665 = vrot.slane %v642, 4
    %v666 = vsel %vm660, %v664, %v665
    %v669 = vsel %vm660, 0.0, %v661
    %v670 = vsel %vm660, 0.0, %v664
    %v671 = vrot.slane %v639, 6
    %v672 = vrot.slane %v640, 6
    %v673 = vsel %vm138, %v671, %v672
    %v674 = vrot.slane %v641, 6
    %v675 = vrot.slane %v642, 6
    %v676 = vsel %vm138, %v674, %v675
    %v679 = vsel %vm138, 0.0, %v671
    %v680 = vsel %vm138, 0.0, %v674
    %683 = vrot.lane.b32.xlu0 %v669, 32
    %v684 = vpop.permute.xlu0 %683
    %685 = vrot.lane.b32.xlu0 %v663, 32
    %v686 = vpop.permute.xlu0 %685
    %687 = vrot.lane.b32.xlu0 %v670, 32
    %v688 = vpop.permute.xlu0 %687
    %689 = vrot.lane.b32.xlu0 %v666, 32
    %v690 = vpop.permute.xlu0 %689
    %697 = vrot.lane.b32.xlu0 %v679, 64
    %v698 = vpop.permute.xlu0 %697
    %699 = vrot.lane.b32.xlu0 %v673, 64
    %v700 = vpop.permute.xlu0 %699
    %701 = vrot.lane.b32.xlu0 %v680, 64
    %v702 = vpop.permute.xlu0 %701
    %703 = vrot.lane.b32.xlu0 %v676, 64
    %v704 = vpop.permute.xlu0 %703
    %709 = vrot.lane.b32.xlu0 %v639, 96
    %v710 = vpop.permute.xlu0 %709
    %711 = vrot.lane.b32.xlu0 %v640, 96
    %v712 = vpop.permute.xlu0 %711
    %713 = vrot.lane.b32.xlu0 %v641, 96
    %v714 = vpop.permute.xlu0 %713
    %715 = vrot.lane.b32.xlu0 %v642, 96
    %v716 = vpop.permute.xlu0 %715
    %v721 = vsel %vm200, %v658, %v684
    %v722 = vsel %vm200, %v650, %v686
    %v723 = vsel %vm200, %v659, %v688
    %v724 = vsel %vm200, %v653, %v690
    %v725 = vsel %vm205, %v721, %v698
    %v726 = vsel %vm205, %v722, %v700
    %v727 = vsel %vm205, %v723, %v702
    %v728 = vsel %vm205, %v724, %v704
    %v729 = vsel %vm210, %v725, %v710
    %v730 = vsel %vm210, %v726, %v712
    %v731 = vsel %vm210, %v727, %v714
    %v732 = vsel %vm210, %v728, %v716
    %v733 = vld [vmem:[#allocation7] sm:$0xff]
    %v734 = vld [vmem:[#allocation7 + $0x8] sm:$0xff]
    %v735 = vld [vmem:[#allocation7 + $0x10] sm:$0xff]
    %v736 = vld [vmem:[#allocation7 + $0x18] sm:$0xff]
    %v737 = vld [vmem:[#allocation7 + $0x20] sm:$0xff]
    %v738 = vld [vmem:[#allocation7 + $0x28] sm:$0xff]
    %v739 = vld [vmem:[#allocation7 + $0x30] sm:$0xff]
    %v740 = vld [vmem:[#allocation7 + $0x38] sm:$0xff]
    %v741 = vld [vmem:[#allocation7 + $0x40] sm:$0xff]
    %v742 = vld [vmem:[#allocation7 + $0x48] sm:$0xff]
    %v743 = vld [vmem:[#allocation7 + $0x50] sm:$0xff]
    %v744 = vld [vmem:[#allocation7 + $0x58] sm:$0xff]
    %v745 = vld [vmem:[#allocation7 + $0x60] sm:$0xff]
    %v746 = vld [vmem:[#allocation7 + $0x68] sm:$0xff]
    %v747 = vld [vmem:[#allocation7 + $0x70] sm:$0xff]
    %v748 = vld [vmem:[#allocation7 + $0x78] sm:$0xff]
    %v749 = vld [vmem:[%s8] sm:$0x1]
    %v751 = vlaneseq
    %v752 = vshrl.u32 %v751, 7
    %v753 = vsub.s32 0, %v752
    %v754 = vrot.slane %v749, %v753
    %756 = vmatprep.subr.mxu0 0.0
    %757 = vmatpush1.msra.mxu0 %v733
    %758 = vmatprep.subr.mxu0 0.0
    %759 = vmatpush1.msra.mxu0 %v734
    %760 = vmatprep.subr.mxu0 0.0
    %761 = vmatpush1.msra.mxu0 %v735
    %762 = vmatprep.subr.mxu0 0.0
    %763 = vmatpush1.msra.mxu0 %v736
    %764 = vmatprep.subr.mxu0 0.0
    %765 = vmatpush1.msra.mxu0 %v737
    %766 = vmatprep.subr.mxu0 0.0
    %767 = vmatpush1.msra.mxu0 %v738
    %768 = vmatprep.subr.mxu0 0.0
    %769 = vmatpush1.msra.mxu0 %v739
    %770 = vmatprep.subr.mxu0 0.0
    %771 = vmatpush1.msra.mxu0 %v740
    %772 = vmatprep.subr.mxu0 0.0
    %773 = vmatpush1.msra.mxu0 %v741
    %774 = vmatprep.subr.mxu0 0.0
    %775 = vmatpush1.msra.mxu0 %v742
    %776 = vmatprep.subr.mxu0 0.0
    %777 = vmatpush1.msra.mxu0 %v743
    %778 = vmatprep.subr.mxu0 0.0
    %779 = vmatpush1.msra.mxu0 %v744
    %780 = vmatprep.subr.mxu0 0.0
    %781 = vmatpush1.msra.mxu0 %v745
    %782 = vmatprep.subr.mxu0 0.0
    %783 = vmatpush1.msra.mxu0 %v746
    %784 = vmatprep.subr.mxu0 0.0
    %785 = vmatpush1.msra.mxu0 %v747
    %786 = vmatprep.subr.mxu0 0.0
    %787 = vmatpush1.msra.mxu0 %v748
    %788 = vmatprep.subr.mxu0 0.0
    %789 = vmatpush1.msra.mxu0 0.0
    %790 = vmatprep.subr.mxu0 0.0
    %791 = vmatpush1.msra.mxu0 0.0
    %792 = vmatprep.subr.mxu0 0.0
    %793 = vmatpush1.msra.mxu0 0.0
    %794 = vmatprep.subr.mxu0 0.0
    %795 = vmatpush1.msra.mxu0 0.0
    %796 = vmatprep.subr.mxu0 0.0
    %797 = vmatpush1.msra.mxu0 0.0
    %798 = vmatprep.subr.mxu0 0.0
    %799 = vmatpush1.msra.mxu0 0.0
    %800 = vmatprep.subr.mxu0 0.0
    %801 = vmatpush1.msra.mxu0 0.0
    %802 = vmatprep.subr.mxu0 0.0
    %803 = vmatpush1.msra.mxu0 0.0
    %804 = vmatprep.subr.mxu0 0.0
    %805 = vmatpush1.msra.mxu0 0.0
    %806 = vmatprep.subr.mxu0 0.0
    %807 = vmatpush1.msra.mxu0 0.0
    %808 = vmatprep.subr.mxu0 0.0
    %809 = vmatpush1.msra.mxu0 0.0
    %810 = vmatprep.subr.mxu0 0.0
    %811 = vmatpush1.msra.mxu0 0.0
    %812 = vmatprep.subr.mxu0 0.0
    %813 = vmatpush1.msra.mxu0 0.0
    %814 = vmatprep.subr.mxu0 0.0
    %815 = vmatpush1.msra.mxu0 0.0
    %816 = vmatprep.subr.mxu0 0.0
    %817 = vmatpush1.msra.mxu0 0.0
    %818 = vmatprep.subr.mxu0 0.0
    %819 = vmatpush1.msra.mxu0 0.0
    %820 = vmatprep.mubr.f32.mxu0 0.0
    %821 = vmatmul.mubr.f32.gmra.mrb[0].mxu0 %v729
    %v822 = vpop.f32.mrb[0].mxu0
    %v823 = vadd.f32 %v754, %v822
    %v824 = vpop.f32.mrb[0].mxu0
    %825 = vmatprep.mubr.f32.mxu0 0.0
    %826 = vmatmul.mubr.f32.gmra.mrb[0].mxu0 %v730
    %v827 = vpop.f32.mrb[0].mxu0
    %v828 = vadd.f32 %v754, %v827
    %v829 = vpop.f32.mrb[0].mxu0
    %830 = vmatprep.mubr.f32.mxu0 0.0
    %831 = vmatmul.mubr.f32.gmra.mrb[0].mxu0 %v731
    %v832 = vpop.f32.mrb[0].mxu0
    %v833 = vadd.f32 %v754, %v832
    %v834 = vpop.f32.mrb[0].mxu0
    %835 = vmatprep.mubr.f32.mxu0 0.0
    %836 = vmatmul.mubr.f32.gmra.mrb[0].mxu0 %v732
    %v837 = vpop.f32.mrb[0].mxu0
    %v838 = vadd.f32 %v754, %v837
    %v839 = vpop.f32.mrb[0].mxu0
    %840 = vdwg.mxu0
    %v841 = vmax.f32 %v823, 0.0
    %v842 = vmax.f32 %v828, 0.0
    %v843 = vmax.f32 %v833, 0.0
    %v844 = vmax.f32 %v838, 0.0
    %v849 = vrot.slane %v841, 2
    %v850 = vrot.slane %v842, 2
    %v851 = vsel %vm647, %v849, %v850
    %v852 = vrot.slane %v843, 2
    %v853 = vrot.slane %v844, 2
    %v854 = vsel %vm647, %v852, %v853
    %v859 = vsel %vm647, 0.0, %v849
    %v860 = vsel %vm647, 0.0, %v852
    %v861 = vrot.slane %v841, 4
    %v862 = vrot.slane %v842, 4
    %v863 = vsel %vm660, %v861, %v862
    %v864 = vrot.slane %v843, 4
    %v865 = vrot.slane %v844, 4
    %v866 = vsel %vm660, %v864, %v865
    %v869 = vsel %vm660, 0.0, %v861
    %v870 = vsel %vm660, 0.0, %v864
    %v871 = vrot.slane %v841, 6
    %v872 = vrot.slane %v842, 6
    %v873 = vsel %vm138, %v871, %v872
    %v874 = vrot.slane %v843, 6
    %v875 = vrot.slane %v844, 6
    %v876 = vsel %vm138, %v874, %v875
    %v879 = vsel %vm138, 0.0, %v871
    %v880 = vsel %vm138, 0.0, %v874
    %883 = vrot.lane.b32.xlu0 %v869, 32
    %v884 = vpop.permute.xlu0 %883
    %885 = vrot.lane.b32.xlu0 %v863, 32
    %v886 = vpop.permute.xlu0 %885
    %887 = vrot.lane.b32.xlu0 %v870, 32
    %v888 = vpop.permute.xlu0 %887
    %889 = vrot.lane.b32.xlu0 %v866, 32
    %v890 = vpop.permute.xlu0 %889
    %897 = vrot.lane.b32.xlu0 %v879, 64
    %v898 = vpop.permute.xlu0 %897
    %899 = vrot.lane.b32.xlu0 %v873, 64
    %v900 = vpop.permute.xlu0 %899
    %901 = vrot.lane.b32.xlu0 %v880, 64
    %v902 = vpop.permute.xlu0 %901
    %903 = vrot.lane.b32.xlu0 %v876, 64
    %v904 = vpop.permute.xlu0 %903
    %909 = vrot.lane.b32.xlu0 %v841, 96
    %v910 = vpop.permute.xlu0 %909
    %911 = vrot.lane.b32.xlu0 %v842, 96
    %v912 = vpop.permute.xlu0 %911
    %913 = vrot.lane.b32.xlu0 %v843, 96
    %v914 = vpop.permute.xlu0 %913
    %915 = vrot.lane.b32.xlu0 %v844, 96
    %v916 = vpop.permute.xlu0 %915
    %v921 = vsel %vm200, %v859, %v884
    %v922 = vsel %vm200, %v851, %v886
    %v923 = vsel %vm200, %v860, %v888
    %v924 = vsel %vm200, %v854, %v890
    %v925 = vsel %vm205, %v921, %v898
    %v926 = vsel %vm205, %v922, %v900
    %v927 = vsel %vm205, %v923, %v902
    %v928 = vsel %vm205, %v924, %v904
    %v929 = vsel %vm210, %v925, %v910
    %v930 = vsel %vm210, %v926, %v912
    %v931 = vsel %vm210, %v927, %v914
    %v932 = vsel %vm210, %v928, %v916
    %v933 = vld [vmem:[#allocation9] sm:$0xff]
    %v934 = vld [vmem:[#allocation9 + $0x8] sm:$0xff]
    %v935 = vld [vmem:[#allocation9 + $0x10] sm:$0xff]
    %v936 = vld [vmem:[#allocation9 + $0x18] sm:$0xff]
    %v937 = vld [vmem:[#allocation9 + $0x20] sm:$0xff]
    %v938 = vld [vmem:[#allocation9 + $0x28] sm:$0xff]
    %v939 = vld [vmem:[#allocation9 + $0x30] sm:$0xff]
    %v940 = vld [vmem:[#allocation9 + $0x38] sm:$0xff]
    %v941 = vld [vmem:[#allocation9 + $0x40] sm:$0xff]
    %v942 = vld [vmem:[#allocation9 + $0x48] sm:$0xff]
    %v943 = vld [vmem:[#allocation9 + $0x50] sm:$0xff]
    %v944 = vld [vmem:[#allocation9 + $0x58] sm:$0xff]
    %v945 = vld [vmem:[#allocation9 + $0x60] sm:$0xff]
    %v946 = vld [vmem:[#allocation9 + $0x68] sm:$0xff]
    %v947 = vld [vmem:[#allocation9 + $0x70] sm:$0xff]
    %v948 = vld [vmem:[#allocation9 + $0x78] sm:$0xff]
    %v949 = vld [vmem:[%s10] sm:$0x1]
    %v951 = vlaneseq
    %v952 = vshrl.u32 %v951, 7
    %v953 = vsub.s32 0, %v952
    %v954 = vrot.slane %v949, %v953
    %956 = vmatprep.subr.mxu0 0.0
    %957 = vmatpush1.msra.mxu0 %v933
    %958 = vmatprep.subr.mxu0 0.0
    %959 = vmatpush1.msra.mxu0 %v934
    %960 = vmatprep.subr.mxu0 0.0
    %961 = vmatpush1.msra.mxu0 %v935
    %962 = vmatprep.subr.mxu0 0.0
    %963 = vmatpush1.msra.mxu0 %v936
    %964 = vmatprep.subr.mxu0 0.0
    %965 = vmatpush1.msra.mxu0 %v937
    %966 = vmatprep.subr.mxu0 0.0
    %967 = vmatpush1.msra.mxu0 %v938
    %968 = vmatprep.subr.mxu0 0.0
    %969 = vmatpush1.msra.mxu0 %v939
    %970 = vmatprep.subr.mxu0 0.0
    %971 = vmatpush1.msra.mxu0 %v940
    %972 = vmatprep.subr.mxu0 0.0
    %973 = vmatpush1.msra.mxu0 %v941
    %974 = vmatprep.subr.mxu0 0.0
    %975 = vmatpush1.msra.mxu0 %v942
    %976 = vmatprep.subr.mxu0 0.0
    %977 = vmatpush1.msra.mxu0 %v943
    %978 = vmatprep.subr.mxu0 0.0
    %979 = vmatpush1.msra.mxu0 %v944
    %980 = vmatprep.subr.mxu0 0.0
    %981 = vmatpush1.msra.mxu0 %v945
    %982 = vmatprep.subr.mxu0 0.0
    %983 = vmatpush1.msra.mxu0 %v946
    %984 = vmatprep.subr.mxu0 0.0
    %985 = vmatpush1.msra.mxu0 %v947
    %986 = vmatprep.subr.mxu0 0.0
    %987 = vmatpush1.msra.mxu0 %v948
    %988 = vmatprep.subr.mxu0 0.0
    %989 = vmatpush1.msra.mxu0 0.0
    %990 = vmatprep.subr.mxu0 0.0
    %991 = vmatpush1.msra.mxu0 0.0
    %992 = vmatprep.subr.mxu0 0.0
    %993 = vmatpush1.msra.mxu0 0.0
    %994 = vmatprep.subr.mxu0 0.0
    %995 = vmatpush1.msra.mxu0 0.0
    %996 = vmatprep.subr.mxu0 0.0
    %997 = vmatpush1.msra.mxu0 0.0
    %998 = vmatprep.subr.mxu0 0.0
    %999 = vmatpush1.msra.mxu0 0.0
    %1000 = vmatprep.subr.mxu0 0.0
    %1001 = vmatpush1.msra.mxu0 0.0
    %1002 = vmatprep.subr.mxu0 0.0
    %1003 = vmatpush1.msra.mxu0 0.0
    %1004 = vmatprep.subr.mxu0 0.0
    %1005 = vmatpush1.msra.mxu0 0.0
    %1006 = vmatprep.subr.mxu0 0.0
    %1007 = vmatpush1.msra.mxu0 0.0
    %1008 = vmatprep.subr.mxu0 0.0
    %1009 = vmatpush1.msra.mxu0 0.0
    %1010 = vmatprep.subr.mxu0 0.0
    %1011 = vmatpush1.msra.mxu0 0.0
    %1012 = vmatprep.subr.mxu0 0.0
    %1013 = vmatpush1.msra.mxu0 0.0
    %1014 = vmatprep.subr.mxu0 0.0
    %1015 = vmatpush1.msra.mxu0 0.0
    %1016 = vmatprep.subr.mxu0 0.0
    %1017 = vmatpush1.msra.mxu0 0.0
    %1018 = vmatprep.subr.mxu0 0.0
    %1019 = vmatpush1.msra.mxu0 0.0
    %1020 = vmatprep.mubr.f32.mxu0 0.0
    %1021 = vmatmul.mubr.f32.gmra.mrb[0].mxu0 %v929
    %v1022 = vpop.f32.mrb[0].mxu0
    %v1023 = vpop.f32.mrb[0].mxu0
    %1024 = vmatprep.mubr.f32.mxu0 0.0
    %1025 = vmatmul.mubr.f32.gmra.mrb[0].mxu0 %v930
    %v1026 = vpop.f32.mrb[0].mxu0
    %v1027 = vadd.f32 %v954, %v1026
    %v1028 = vpop.f32.mrb[0].mxu0
    %1029 = vmatprep.mubr.f32.mxu0 0.0
    %1030 = vmatmul.mubr.f32.gmra.mrb[0].mxu0 %v931
    %v1031 = vpop.f32.mrb[0].mxu0
    %v1032 = vpop.f32.mrb[0].mxu0
    %1033 = vmatprep.mubr.f32.mxu0 0.0
    %1034 = vmatmul.mubr.f32.gmra.mrb[0].mxu0 %v932
    %v1035 = vpop.f32.mrb[0].mxu0
    %v1036 = vadd.f32 %v954, %v1035
    %v1037 = vpop.f32.mrb[0].mxu0
    %1038 = vdwg.mxu0
    %v1039 = vmax.f32 %v1027, 0.0
    %v1040 = vmax.f32 %v1036, 0.0
    %v1041 = vadd.f32 %v1039, %v640
    %v1042 = vadd.f32 %v1040, %v642
    %v1043 = vmax.f32 %v1041, 0.0
    %v1044 = vmax.f32 %v1042, 0.0
    %v1045 = vld [vmem:[%s11] sm:$0xff]
    %v1046 = vld [vmem:[%s11 + $0x8] sm:$0xff]
    %v1047 = vld [vmem:[%s11 + $0x10] sm:$0xff]
    %v1048 = vld [vmem:[%s11 + $0x18] sm:$0xff]
    %v1049 = vld [vmem:[%s11 + $0x20] sm:$0xff]
    %v1050 = vld [vmem:[%s11 + $0x28] sm:$0xff]
    %v1051 = vld [vmem:[%s11 + $0x30] sm:$0xff]
    %v1052 = vld [vmem:[%s11 + $0x38] sm:$0xff]
    %v1053 = vld [vmem:[%s11 + $0x40] sm:$0xff]
    %v1054 = vld [vmem:[%s11 + $0x48] sm:$0xff]
    %v1055 = vld [vmem:[%s11 + $0x50] sm:$0xff]
    %v1056 = vld [vmem:[%s11 + $0x58] sm:$0xff]
    %v1057 = vld [vmem:[%s11 + $0x60] sm:$0xff]
    %v1058 = vld [vmem:[%s11 + $0x68] sm:$0xff]
    %v1059 = vld [vmem:[%s11 + $0x70] sm:$0xff]
    %v1060 = vld [vmem:[%s11 + $0x78] sm:$0xff]
    %v1061 = vld [vmem:[%s12] sm:$0x1]
    %v1063 = vlaneseq
    %v1064 = vshrl.u32 %v1063, 7
    %v1065 = vsub.s32 0, %v1064
    %v1066 = vrot.slane %v1061, %v1065
    %v1070 = vrot.slane %v1043, 7
    %v1071 = vrot.slane %v1044, 6
    %vm1072 = vcmask 1041409
    %v1073 = vsel %vm1072, %v1071, %v1070
    %1075 = vmatprep.subr.mxu0 0.0
    %1076 = vmatpush1.msra.mxu0 %v1045
    %1077 = vmatprep.subr.mxu0 0.0
    %1078 = vmatpush1.msra.mxu0 %v1046
    %1079 = vmatprep.subr.mxu0 0.0
    %1080 = vmatpush1.msra.mxu0 %v1047
    %1081 = vmatprep.subr.mxu0 0.0
    %1082 = vmatpush1.msra.mxu0 %v1048
    %1083 = vmatprep.subr.mxu0 0.0
    %1084 = vmatpush1.msra.mxu0 %v1049
    %1085 = vmatprep.subr.mxu0 0.0
    %1086 = vmatpush1.msra.mxu0 %v1050
    %1087 = vmatprep.subr.mxu0 0.0
    %1088 = vmatpush1.msra.mxu0 %v1051
    %1089 = vmatprep.subr.mxu0 0.0
    %1090 = vmatpush1.msra.mxu0 %v1052
    %1091 = vmatprep.subr.mxu0 0.0
    %1092 = vmatpush1.msra.mxu0 %v1053
    %1093 = vmatprep.subr.mxu0 0.0
    %1094 = vmatpush1.msra.mxu0 %v1054
    %1095 = vmatprep.subr.mxu0 0.0
    %1096 = vmatpush1.msra.mxu0 %v1055
    %1097 = vmatprep.subr.mxu0 0.0
    %1098 = vmatpush1.msra.mxu0 %v1056
    %1099 = vmatprep.subr.mxu0 0.0
    %1100 = vmatpush1.msra.mxu0 %v1057
    %1101 = vmatprep.subr.mxu0 0.0
    %1102 = vmatpush1.msra.mxu0 %v1058
    %1103 = vmatprep.subr.mxu0 0.0
    %1104 = vmatpush1.msra.mxu0 %v1059
    %1105 = vmatprep.subr.mxu0 0.0
    %1106 = vmatpush1.msra.mxu0 %v1060
    %1107 = vmatprep.subr.mxu0 0.0
    %1108 = vmatpush1.msra.mxu0 0.0
    %1109 = vmatprep.subr.mxu0 0.0
    %1110 = vmatpush1.msra.mxu0 0.0
    %1111 = vmatprep.subr.mxu0 0.0
    %1112 = vmatpush1.msra.mxu0 0.0
    %1113 = vmatprep.subr.mxu0 0.0
    %1114 = vmatpush1.msra.mxu0 0.0
    %1115 = vmatprep.subr.mxu0 0.0
    %1116 = vmatpush1.msra.mxu0 0.0
    %1117 = vmatprep.subr.mxu0 0.0
    %1118 = vmatpush1.msra.mxu0 0.0
    %1119 = vmatprep.subr.mxu0 0.0
    %1120 = vmatpush1.msra.mxu0 0.0
    %1121 = vmatprep.subr.mxu0 0.0
    %1122 = vmatpush1.msra.mxu0 0.0
    %1123 = vmatprep.subr.mxu0 0.0
    %1124 = vmatpush1.msra.mxu0 0.0
    %1125 = vmatprep.subr.mxu0 0.0
    %1126 = vmatpush1.msra.mxu0 0.0
    %1127 = vmatprep.subr.mxu0 0.0
    %1128 = vmatpush1.msra.mxu0 0.0
    %1129 = vmatprep.subr.mxu0 0.0
    %1130 = vmatpush1.msra.mxu0 0.0
    %1131 = vmatprep.subr.mxu0 0.0
    %1132 = vmatpush1.msra.mxu0 0.0
    %1133 = vmatprep.subr.mxu0 0.0
    %1134 = vmatpush1.msra.mxu0 0.0
    %1135 = vmatprep.subr.mxu0 0.0
    %1136 = vmatpush1.msra.mxu0 0.0
    %1137 = vmatprep.subr.mxu0 0.0
    %1138 = vmatpush1.msra.mxu0 0.0
    %1139 = vmatprep.mubr.f32.mxu0 0.0
    %1140 = vmatmul.mubr.f32.gmra.mrb[0].mxu0 %v1073
    %v1141 = vpop.f32.mrb[0].mxu0
    %v1142 = vadd.f32 %v1066, %v1141
    %v1143 = vpop.f32.mrb[0].mxu0
    %1144 = vdwg.mxu0
    %v1147 = vunpack.c.l.s4 1966171168
    %v1148 = vunpack.c.0.s8 %v1147
    %v1149 = vlaneseq
    %v1150 = vshrl.u32 %v1149, 7
    %v1151 = vsub.s32 %v1148, %v1150
    %v1152 = vrot.slane %v1142, %v1151
    %v1153 = vcombine.high %v1152, %v1152
    %v1155 = vunpack.c.l.s4 1966171168
    %v1156 = vunpack.c.0.s8 %v1155
    %v1157 = vlaneseq
    %v1158 = vshrl.u32 %v1157, 7
    %v1159 = vsub.s32 %v1156, %v1158
    %v1160 = vrot.slane %v1152, %v1159
    %v1162 = vunpack.c.l.s4 1966171168
    %v1163 = vunpack.c.0.s8 %v1162
    %v1164 = vlaneseq
    %v1165 = vshrl.u32 %v1164, 7
    %v1166 = vsub.s32 %v1163, %v1165
    %v1167 = vrot.slane %v1153, %v1166
    %1170 = vst [vmem:[%s13] sm:$0x1] %v1160
    %1171 = vst [vmem:[%s13 + $0x1] sm:$0x1] %v1167
    // Predicated region
    $region74: #{_lambda_.1} parent=1 // pred_check
      _
    $region75: #{_lambda_.1} parent=1 // pred_check_branch
      %1173 = sbr.rel (0) target = $region77
    $region76: #{_lambda_.1} parent=1 // pred_region
      _
    $region77: #{_lambda_.1} parent=1 // pred_fallthru
      _
    // Predicated region
    $region78: #{_lambda_.1} parent=1 // pred_check
      _
    $region79: #{_lambda_.1} parent=1 // pred_check_branch
      %1175 = sbr.rel (0) target = $region81
    $region80: #{_lambda_.1} parent=1 // pred_region
      _
    $region81: #{_lambda_.1} parent=1 // pred_fallthru
      _
    %1176 = vsyncpa [#allocation3], 1
    %1177 = vsyncpa [#allocation5], 1
    %1178 = vsyncpa [#allocation8], 1

</llo_original>
